<compile_context>
chip_gen: v5e
topology: v5e:2x2
jax: 0.10.0
libtpu: 0.0.40
codegen_flags: <defaults>
</compile_context>

<pallas_src>
import numpy as np
import jax
import jax.numpy as jnp
from jax.experimental import pallas as pl
from jax.experimental.pallas import tpu as pltpu

SEP_TOKEN = 102


def qa_head_kernel(x_ref, wp_ref, brow_ref, mbias_ref, start_ref, end_ref):
    """Fused QA head: one MXU matmul for both heads + mask bias + LogSoftmax(seq).

    x_ref     : (TB, S_pad, H) bf16 VMEM  -- batch tile of last_hidden_state (seq zero-padded)
    wp_ref    : (H, 128)       bf16 VMEM  -- lane 0 = start weight, lane 1 = end weight
    brow_ref  : (1, 128)       f32  VMEM  -- lane 0 = start bias,   lane 1 = end bias
    mbias_ref : (TB, S_pad)    bf16 VMEM  -- additive mask: 0 keep, -inf masked/padded
    start_ref : (TB, S_pad)    f32  VMEM  -- log-softmax(start logits) over seq axis
    end_ref   : (TB, S_pad)    f32  VMEM
    """
    TB, S_pad, H = x_ref.shape

    # One fused MXU matmul for both heads over the whole batch tile.
    # Collapsing (TB, S_pad, H) -> (TB*S_pad, H) only merges leading dims
    # (S_pad % 8 == 0), so it is a layout no-op.
    x2 = x_ref[...].reshape(TB * S_pad, H)                               # bf16
    r = jnp.dot(x2, wp_ref[...], preferred_element_type=jnp.float32)    # (TB*S_pad, 128) f32
    r = r + brow_ref[...]                                                # add head biases

    # Move the (batch*seq) rows into lanes: 2-D f32 transpose -> XLU slot.
    rt = jnp.transpose(r)                                                # (128, TB*S_pad)

    # Additive mask: -inf at masked and seq-padded positions.  Position 0 is
    # always kept by construction, so every row has a finite max and the
    # log-softmax below never sees an all -inf row / NaN.
    mbias = mbias_ref[...].astype(jnp.float32)                           # (TB, S_pad)

    def log_softmax_head(lane):
        # S_pad is a multiple of 128, so this is a pure tile-aligned retile of
        # the lane-dense head row (no cross-lane gather, no concatenate).
        logits = rt[lane:lane + 1, :].reshape(TB, S_pad) + mbias
        mx = jnp.max(logits, axis=1, keepdims=True)
        z = logits - mx
        return z - jnp.log(jnp.sum(jnp.exp(z), axis=1, keepdims=True))

    start_ref[...] = log_softmax_head(0)
    end_ref[...] = log_softmax_head(1)


def _vmem_plan():
    """Per-generation VMEM plan: (Mosaic vmem_limit_bytes, tile-sizing budget)."""
    cap = 64 * 1024 * 1024                      # conservative fallback (v7x physical)
    try:
        info = pltpu.get_tpu_info()
        cap = int(getattr(info, "vmem_capacity_bytes", cap)) or cap
    except Exception:
        pass
    # ~80% of physical: ~102 MiB on v5e/v6e (128 MiB), ~51 MiB on v7x (64 MiB).
    limit = max(int(cap * 0.8), 32 * 1024 * 1024)
    budget = max(limit - 8 * 1024 * 1024, 16 * 1024 * 1024)   # headroom for Mosaic internals
    return limit, budget


def _tile_bytes(tb, s_pad, h):
    """VMEM footprint estimate for one batch tile (double-buffered pipeline)."""
    emb = 2 * tb * s_pad * h * 2                 # embeds block, bf16, 2 buffers
    msk = 2 * tb * s_pad * 2                     # mask bias block, bf16, 2 buffers
    outs = 2 * 2 * tb * s_pad * 4                # two f32 outputs, 2 buffers
    wts = 2 * (h * 128 * 2 + 128 * 4)            # packed weights + bias row, 2 buffers
    inter = 2 * tb * s_pad * 128 * 4 + 4 * tb * s_pad * 4   # matmul result + transpose + softmax temps
    return emb + msk + outs + wts + inter


def _pick_tile_b(B, S_pad, H, vmem_budget_bytes):
    """Largest batch tile (multiple of 8 dividing B, or B itself) fitting the VMEM
    budget; prefers >=2 grid steps so v7x's two TensorCores both get work."""
    cands = sorted({tb for tb in range(8, B, 8) if B % tb == 0} | {B})
    fitting = [tb for tb in cands if _tile_bytes(tb, S_pad, H) <= vmem_budget_bytes]
    if not fitting:
        return cands[0]                          # smallest candidate; best effort
    tb = fitting[-1]
    if tb == B and len(fitting) > 1:
        tb = fitting[-2]                         # keep the parallel grid axis >= 2 tiles
    return tb


def qa_head(embeds, w_start, b_start, w_end, b_end, mask):
    """Wrapper: pads the seq axis, packs weights / mask bias, launches the kernel."""
    B, S, H = embeds.shape
    S_pad = ((S + 127) // 128) * 128

    # bf16 activations -> halved HBM traffic; MXU accumulates in f32.
    # Zero-pad the sequence axis so the in-kernel retile is tile-aligned.
    x = embeds.astype(jnp.bfloat16)
    if S_pad > S:
        x = jnp.pad(x, ((0, 0), (0, S_pad - S), (0, 0)))

    # Pre-packed MXU RHS: (H, 128) with the two head weights in lanes 0 and 1.
    wp = jnp.zeros((H, 128), jnp.float32)
    wp = wp.at[:, 0].set(w_start.astype(jnp.float32))
    wp = wp.at[:, 1].set(w_end.astype(jnp.float32))
    wp = wp.astype(jnp.bfloat16)

    # Bias row (f32): lane 0 = start bias, lane 1 = end bias.
    brow = jnp.zeros((1, 128), jnp.float32)
    brow = brow.at[0, 0].set(jnp.float32(b_start)).at[0, 1].set(jnp.float32(b_end))

    # Additive mask bias (bf16, -inf is representable): 0 keep, -inf masked;
    # seq-padding lanes are also -inf.  Position 0 is always kept (finite max).
    mb = jnp.where(mask.astype(jnp.float32) > 0.5,
                   jnp.float32(-jnp.inf), jnp.float32(0.0))
    mb = jnp.pad(mb, ((0, 0), (0, S_pad - S)), constant_values=-jnp.inf)
    mb = mb.astype(jnp.bfloat16)

    vmem_limit, vmem_budget = _vmem_plan()
    TB = _pick_tile_b(B, S_pad, H, vmem_budget)

    out_sds = jax.ShapeDtypeStruct((B, S_pad), jnp.float32)
    start_p, end_p = pl.pallas_call(
        qa_head_kernel,
        out_shape=(out_sds, out_sds),
        grid=(B // TB,),
        in_specs=[
            pl.BlockSpec((TB, S_pad, H), lambda i: (i, 0, 0)),     # embeds batch tile
            pl.BlockSpec((H, 128), lambda i: (0, 0)),              # packed head weights
            pl.BlockSpec((1, 128), lambda i: (0, 0)),              # packed head biases
            pl.BlockSpec((TB, S_pad), lambda i: (i, 0)),           # additive mask bias
        ],
        out_specs=(
            pl.BlockSpec((TB, S_pad), lambda i: (i, 0)),
            pl.BlockSpec((TB, S_pad), lambda i: (i, 0)),
        ),
        compiler_params=pltpu.CompilerParams(
            dimension_semantics=("parallel",),     # v7x: 2 TCs split batch tiles
            vmem_limit_bytes=vmem_limit,           # per-generation cap (see _vmem_plan)
        ),
    )(x, wp, brow, mb)

    return start_p[:, :S], end_p[:, :S]


def build_sep_mask(input_ids_np):
    """Replicates the numpy loop in Bert_QA_Model.forward exactly (1 -> fill -inf)."""
    mask = np.ones(input_ids_np.shape, dtype=np.float32)
    for i, seq in enumerate(input_ids_np):
        seps = np.where(seq == SEP_TOKEN)[0]
        mask[i, seps[0] + 1:seps[1]] = 0
    mask[:, 0] = 0
    return mask


def fake_distilbert_embeds(input_ids, tok_emb, pos_emb):
    """Deterministic stand-in for DistilBertModel(...).last_hidden_state.

    # TODO(synk): pretrained 'distilbert-base-uncased' encoder stack is not
    # reproducible in-script; a deterministic embedding lookup stands in for it.
    """
    B, S = input_ids.shape
    h = tok_emb[input_ids] + pos_emb[None, :S, :]
    mu = jnp.mean(h, axis=-1, keepdims=True)
    var = jnp.var(h, axis=-1, keepdims=True)
    return (h - mu) * jax.lax.rsqrt(var + 1e-5)


if __name__ == "__main__":
    B, S, H = 16, 16, 32
    VOCAB = 256

    key = jax.random.PRNGKey(0)
    k_tok, k_pos, k_ws, k_bs, k_we, k_be, k_ids = jax.random.split(key, 7)

    # Deterministic "parameters" (nn.Linear(hidden_dim, 1) weight (1, H) flattened).
    tok_emb = jax.random.normal(k_tok, (VOCAB, H), jnp.float32) * 0.02
    pos_emb = jax.random.normal(k_pos, (S, H), jnp.float32) * 0.02
    w_start = jax.random.normal(k_ws, (H,), jnp.float32) * 0.1
    b_start = jax.random.normal(k_bs, (), jnp.float32) * 0.1
    w_end = jax.random.normal(k_we, (H,), jnp.float32) * 0.1
    b_end = jax.random.normal(k_be, (), jnp.float32) * 0.1

    # Deterministic input_ids with exactly two SEP (=102) tokens per sequence.
    ids = np.asarray(
        jax.random.randint(k_ids, (B, S), 0, VOCAB, dtype=jnp.int32)
    ).copy()
    ids[ids == SEP_TOKEN] = 103                       # clear accidental SEPs
    for i in range(B):
        ids[i, 2 + (i % 3)] = SEP_TOKEN               # first SEP in {2,3,4}
        ids[i, 10 + (i % 4)] = SEP_TOKEN              # second SEP in {10..13}
    input_ids = jnp.asarray(ids, dtype=jnp.int32)

    # forward()
    embeds = fake_distilbert_embeds(input_ids, tok_emb, pos_emb)      # (B, S, H)
    mask = jnp.asarray(build_sep_mask(ids))                           # (B, S), 1 -> -inf
    start_probs, end_probs = qa_head(embeds, w_start, b_start, w_end, b_end, mask)
    jax.block_until_ready((start_probs, end_probs))

    # Reference in plain JAX on the same bf16-rounded inputs the kernel consumes.
    def ref_head(w, b):
        xb = embeds.astype(jnp.bfloat16).astype(jnp.float32)
        wb = w.astype(jnp.bfloat16).astype(jnp.float32)
        logits = jnp.einsum("bsh,h->bs", xb, wb) + b
        logits = jnp.where(mask > 0.5, -jnp.inf, logits)
        return jax.nn.log_softmax(logits, axis=1)

    ref_start = ref_head(w_start, b_start)
    ref_end = ref_head(w_end, b_end)

    def close(a, b):
        a, b = np.asarray(a), np.asarray(b)
        finite = np.isfinite(b)
        ok_fin = np.allclose(a[finite], b[finite], atol=2e-3, rtol=2e-3)
        ok_inf = np.array_equal(np.isneginf(a), np.isneginf(b))
        return ok_fin and ok_inf

    assert start_probs.shape == (B, S) and end_probs.shape == (B, S)
    assert close(start_probs, ref_start), "start_probs mismatch"
    assert close(end_probs, ref_end), "end_probs mismatch"
    print("KERNEL_OK")
</pallas_src>

<mosaic_0001>
module attributes {stable_mosaic.version = 11 : i64} {
  func.func @qa_head_kernel(%arg0: i32, %arg1: memref<8x128x32xbf16, #tpu.memory_space<vmem>>, %arg2: memref<32x128xbf16, #tpu.memory_space<vmem>>, %arg3: memref<1x128xf32, #tpu.memory_space<vmem>>, %arg4: memref<8x128xbf16, #tpu.memory_space<vmem>>, %arg5: memref<8x128xf32, #tpu.memory_space<vmem>>, %arg6: memref<8x128xf32, #tpu.memory_space<vmem>>) attributes {dimension_semantics = [#tpu.dimension_semantics<parallel>], iteration_bounds = array<i64: 2>, scalar_prefetch = 0 : i64, scratch_operands = 0 : i64, tpu.core_type = #tpu.core_type<tc>, window_params = [{transform_indices = @transform_0, window_bounds = array<i64: 8, 128, 32>}, {pipeline_mode = #tpu.pipeline_mode<synchronous>, transform_indices = @transform_1, window_bounds = array<i64: 32, 128>}, {pipeline_mode = #tpu.pipeline_mode<synchronous>, transform_indices = @transform_2, window_bounds = array<i64: 1, 128>}, {transform_indices = @transform_3, window_bounds = array<i64: 8, 128>}, {transform_indices = @transform_4, window_bounds = array<i64: 8, 128>}, {transform_indices = @transform_5, window_bounds = array<i64: 8, 128>}]} {
    %c0 = arith.constant 0 : index
    %c0_0 = arith.constant 0 : index
    %c0_1 = arith.constant 0 : index
    %0 = vector.load %arg1[%c0, %c0_0, %c0_1] : memref<8x128x32xbf16, #tpu.memory_space<vmem>>, vector<8x128x32xbf16>
    %1 = vector.shape_cast %0 : vector<8x128x32xbf16> to vector<1024x32xbf16>
    %c0_2 = arith.constant 0 : index
    %c0_3 = arith.constant 0 : index
    %2 = vector.load %arg2[%c0_2, %c0_3] : memref<32x128xbf16, #tpu.memory_space<vmem>>, vector<32x128xbf16>
    %cst = arith.constant dense<0.000000e+00> : vector<1024x128xf32>
    %3 = tpu.matmul %1, %2, %cst {dimension_numbers = #tpu.dot_dimension_numbers<[1], [0], [0], [1], [0, 0, 1, 1], [], []>} : vector<1024x32xbf16>, vector<32x128xbf16>, vector<1024x128xf32> -> vector<1024x128xf32>
    %c0_4 = arith.constant 0 : index
    %c0_5 = arith.constant 0 : index
    %4 = vector.load %arg3[%c0_4, %c0_5] : memref<1x128xf32, #tpu.memory_space<vmem>>, vector<1x128xf32>
    %5 = vector.broadcast %4 : vector<1x128xf32> to vector<1024x128xf32>
    %6 = arith.addf %3, %5 : vector<1024x128xf32>
    %7 = tpu.transpose %6, [1, 0] : vector<1024x128xf32> -> vector<128x1024xf32>
    %c0_6 = arith.constant 0 : index
    %c0_7 = arith.constant 0 : index
    %8 = vector.load %arg4[%c0_6, %c0_7] : memref<8x128xbf16, #tpu.memory_space<vmem>>, vector<8x128xbf16>
    %9 = arith.extf %8 : vector<8x128xbf16> to vector<8x128xf32>
    %10 = vector.extract_strided_slice %7 {offsets = [0, 0], sizes = [1, 1024], strides = [1, 1]} : vector<128x1024xf32> to vector<1x1024xf32>
    %11 = vector.shape_cast %10 : vector<1x1024xf32> to vector<8x128xf32>
    %12 = arith.addf %11, %9 : vector<8x128xf32>
    %cst_8 = arith.constant dense<0xFF800000> : vector<8xf32>
    %13 = vector.multi_reduction <maximumf>, %12, %cst_8 [1] : vector<8x128xf32> to vector<8xf32>
    %14 = vector.shape_cast %13 : vector<8xf32> to vector<8x1xf32>
    %15 = vector.broadcast %14 : vector<8x1xf32> to vector<8x128xf32>
    %16 = arith.subf %12, %15 : vector<8x128xf32>
    %17 = math.exp %16 : vector<8x128xf32>
    %cst_9 = arith.constant dense<0.000000e+00> : vector<8xf32>
    %18 = vector.multi_reduction <add>, %17, %cst_9 [1] : vector<8x128xf32> to vector<8xf32>
    %19 = vector.shape_cast %18 : vector<8xf32> to vector<8x1xf32>
    %20 = math.log %19 : vector<8x1xf32>
    %21 = vector.broadcast %20 : vector<8x1xf32> to vector<8x128xf32>
    %22 = arith.subf %16, %21 : vector<8x128xf32>
    %c0_10 = arith.constant 0 : index
    %c0_11 = arith.constant 0 : index
    %23 = vector.load %arg5[%c0_10, %c0_11] : memref<8x128xf32, #tpu.memory_space<vmem>>, vector<8x128xf32>
    tpu.vector_store %arg5[%c0_10, %c0_11], %22 {strides = array<i32>} : memref<8x128xf32, #tpu.memory_space<vmem>>, vector<8x128xf32>,
    %24 = vector.extract_strided_slice %7 {offsets = [1, 0], sizes = [1, 1024], strides = [1, 1]} : vector<128x1024xf32> to vector<1x1024xf32>
    %25 = vector.shape_cast %24 : vector<1x1024xf32> to vector<8x128xf32>
    %26 = arith.addf %25, %9 : vector<8x128xf32>
    %cst_12 = arith.constant dense<0xFF800000> : vector<8xf32>
    %27 = vector.multi_reduction <maximumf>, %26, %cst_12 [1] : vector<8x128xf32> to vector<8xf32>
    %28 = vector.shape_cast %27 : vector<8xf32> to vector<8x1xf32>
    %29 = vector.broadcast %28 : vector<8x1xf32> to vector<8x128xf32>
    %30 = arith.subf %26, %29 : vector<8x128xf32>
    %31 = math.exp %30 : vector<8x128xf32>
    %cst_13 = arith.constant dense<0.000000e+00> : vector<8xf32>
    %32 = vector.multi_reduction <add>, %31, %cst_13 [1] : vector<8x128xf32> to vector<8xf32>
    %33 = vector.shape_cast %32 : vector<8xf32> to vector<8x1xf32>
    %34 = math.log %33 : vector<8x1xf32>
    %35 = vector.broadcast %34 : vector<8x1xf32> to vector<8x128xf32>
    %36 = arith.subf %30, %35 : vector<8x128xf32>
    %c0_14 = arith.constant 0 : index
    %c0_15 = arith.constant 0 : index
    %37 = vector.load %arg6[%c0_14, %c0_15] : memref<8x128xf32, #tpu.memory_space<vmem>>, vector<8x128xf32>
    tpu.vector_store %arg6[%c0_14, %c0_15], %36 {strides = array<i32>} : memref<8x128xf32, #tpu.memory_space<vmem>>, vector<8x128xf32>,
    return
  }
  func.func @transform_0(%arg0: i32) -> (i32, i32, i32) {
    %c0_i32 = arith.constant 0 : i32
    %c0_i32_0 = arith.constant 0 : i32
    %c0_i32_1 = arith.constant 0 : i32
    return %arg0, %c0_i32, %c0_i32_0 : i32, i32, i32
  }
  func.func @transform_1(%arg0: i32) -> (i32, i32) {
    %c0_i32 = arith.constant 0 : i32
    %c0_i32_0 = arith.constant 0 : i32
    %c0_i32_1 = arith.constant 0 : i32
    return %c0_i32, %c0_i32_0 : i32, i32
  }
  func.func @transform_2(%arg0: i32) -> (i32, i32) {
    %c0_i32 = arith.constant 0 : i32
    %c0_i32_0 = arith.constant 0 : i32
    %c0_i32_1 = arith.constant 0 : i32
    return %c0_i32, %c0_i32_0 : i32, i32
  }
  func.func @transform_3(%arg0: i32) -> (i32, i32) {
    %c0_i32 = arith.constant 0 : i32
    %c0_i32_0 = arith.constant 0 : i32
    return %arg0, %c0_i32 : i32, i32
  }
  func.func @transform_4(%arg0: i32) -> (i32, i32) {
    %c0_i32 = arith.constant 0 : i32
    %c0_i32_0 = arith.constant 0 : i32
    return %arg0, %c0_i32 : i32, i32
  }
  func.func @transform_5(%arg0: i32) -> (i32, i32) {
    %c0_i32 = arith.constant 0 : i32
    %c0_i32_0 = arith.constant 0 : i32
    return %arg0, %c0_i32 : i32, i32
  }
}

</mosaic_0001>

<llo_original>
// kernel: tpu_custom_call.1
$region0: #{tpu_custom_call.1}
  #allocation0 [shape = 'u32[]', space=smem, size = 0x4, offset = 0x4, fixed_abs, tag = 'smem constant byte address 0x4 - core index']
  #allocation1 [shape = 'u32[72,128]{1,0:T(1,128)}', space=vmem, size = 0x9000, scoped, tag = 'internal scratch']
  %s0 = inlined_call_operand.vmem [shape: bf16[16,128,32], index: 0, kind: input, shape index: {}]
  %s1 = inlined_call_operand.vmem [shape: bf16[32,128], index: 1, kind: input, shape index: {}]
  %s2 = inlined_call_operand.vmem [shape: f32[1,128], index: 2, kind: input, shape index: {}]
  %s3 = inlined_call_operand.vmem [shape: bf16[16,128], index: 3, kind: input, shape index: {}]
  %s4 = inlined_call_operand.hbm [shape: f32[16,128], index: 4, kind: output, shape index: {0}]
  %s5 = inlined_call_operand.hbm [shape: f32[16,128], index: 5, kind: output, shape index: {1}]
  %6 = xla_tuple %s4, %s5
  %s7 = sld [smem:[#allocation0]]
  $region57: #{tpu_custom_call.1} parent=0
    _
  %s9 = ssub.s32 1, %s7
  %s10 = scalar_select 0, %s9, %s7
  $region1: #{tpu_custom_call.1} parent=0
    #allocation2 [shape = 'u8[8192]{0}', space=vmem, size = 0x2000, scoped, tag = 'output window, operand 0']
    #allocation3 [shape = 's32[2]{0}', space=sflag, size = 0x8, scoped, tag = 'scoped memory for tpu_custom_call.1']
    #allocation4 [shape = 'u8[8192]{0}', space=vmem, size = 0x2000, scoped, tag = 'output window, operand 1']
    #allocation5 [shape = 's32[2]{0}', space=sflag, size = 0x8, scoped, tag = 'scoped memory for tpu_custom_call.1']
    %11 = vsyncpa [#allocation3], 0
    %s12 = scalar_lea.sflag [#allocation3], 1
    %13 = vsyncpa %s12, 0
    %14 = vsyncpa [#allocation5], 0
    %s15 = scalar_lea.sflag [#allocation5], 1
    %16 = vsyncpa %s15, 0
    loop: start=0, step=1, limit=4
    $region2: #{tpu_custom_call.1} parent=1 // loop_pre_header
      _
    $region3: #{tpu_custom_call.1} parent=1 // loop_header
      %s18 = sphi 0, %s22
      %p19 = scmp.ge.s32.totalorder %s18, 4
      %s28 = sphi 0, %s30
      %s31 = sphi 0, %s28
      %s32 = sphi 0, %s31
      %s48 = sphi 0, %s32
      %s52 = sphi 0, %s52
      %s54 = sphi 0, %s52
      %s55 = sphi 0, %s54
      %s69 = sphi 0, %s55
      %s73 = sphi 0, %s73
      %s75 = sphi 0, %s73
      %s76 = sphi 0, %s75
      %s90 = sphi 0, %s76
      %s96 = sphi 0, %s98
      %s99 = sphi 0, %s96
      %s100 = sphi 0, %s99
      %s116 = sphi 0, %s100
      %s122 = sphi 0, %s124
      %s125 = sphi 0, %s122
      %s126 = sphi 0, %s125
      %s142 = sphi 0, %s126
      %s148 = sphi 0, %s150
      %s151 = sphi 0, %s148
      %s152 = sphi 0, %s151
      %s168 = sphi 0, %s152
    $region4: #{tpu_custom_call.1} parent=1 // loop_header_branch
      %21 = sbr.rel (%p19) target = $region8
    $region5: #{tpu_custom_call.1} parent=1 // loop_body
      %s23 = ssub.s32 %s18, 1
      %s24 = ssub.s32 %s18, 2
      %s25 = sadd.s32 %s18, 1
      %s26 = ssub.s32 %s18, %s25
      %p27 = scmp.eq.s32.totalorder %s26, 0
      %s29 = sadd.s32 %s28, 1
      %s30 = scalar_select %p27, %s28, %s29
      %p33 = pneg %p27
      %p34 = scmp.eq.s32.totalorder %s18, 1
      %p35 = por %p33, %p34
      %p36 = scmp.ne.s32.totalorder %s28, %s31
      %p37 = scmp.eq.s32.totalorder %s18, 0
      %p38 = por %p36, %p37
      %p39 = scmp.ne.s32.totalorder %s28, %s31
      %p40 = scmp.eq.s32.totalorder %s23, 1
      %p41 = por %p39, %p40
      %p42 = scmp.ne.s32.totalorder %s31, %s32
      %p43 = scmp.eq.s32.totalorder %s23, 0
      %p44 = por %p42, %p43
      %p45 = scmp.ne.s32.totalorder %s31, %s32
      %p46 = scmp.eq.s32.totalorder %s24, 1
      %p47 = por %p45, %p46
      %p49 = scmp.ne.s32.totalorder %s32, %s48
      %p50 = scmp.eq.s32.totalorder %s24, 0
      %p51 = por %p49, %p50
      %s53 = sadd.s32 %s52, 1
      %p56 = scmp.eq.s32.totalorder %s18, 1
      %p57 = scmp.ne.s32.totalorder %s52, %s54
      %p58 = scmp.eq.s32.totalorder %s18, 0
      %p59 = por %p57, %p58
      %p60 = scmp.ne.s32.totalorder %s52, %s54
      %p61 = scmp.eq.s32.totalorder %s23, 1
      %p62 = por %p60, %p61
      %p63 = scmp.ne.s32.totalorder %s54, %s55
      %p64 = scmp.eq.s32.totalorder %s23, 0
      %p65 = por %p63, %p64
      %p66 = scmp.ne.s32.totalorder %s54, %s55
      %p67 = scmp.eq.s32.totalorder %s24, 1
      %p68 = por %p66, %p67
      %p70 = scmp.ne.s32.totalorder %s55, %s69
      %p71 = scmp.eq.s32.totalorder %s24, 0
      %p72 = por %p70, %p71
      %s74 = sadd.s32 %s73, 1
      %p77 = scmp.eq.s32.totalorder %s18, 1
      %p78 = scmp.ne.s32.totalorder %s73, %s75
      %p79 = scmp.eq.s32.totalorder %s18, 0
      %p80 = por %p78, %p79
      %p81 = scmp.ne.s32.totalorder %s73, %s75
      %p82 = scmp.eq.s32.totalorder %s23, 1
      %p83 = por %p81, %p82
      %p84 = scmp.ne.s32.totalorder %s75, %s76
      %p85 = scmp.eq.s32.totalorder %s23, 0
      %p86 = por %p84, %p85
      %p87 = scmp.ne.s32.totalorder %s75, %s76
      %p88 = scmp.eq.s32.totalorder %s24, 1
      %p89 = por %p87, %p88
      %p91 = scmp.ne.s32.totalorder %s76, %s90
      %p92 = scmp.eq.s32.totalorder %s24, 0
      %p93 = por %p91, %p92
      %s94 = ssub.s32 %s18, %s25
      %p95 = scmp.eq.s32.totalorder %s94, 0
      %s97 = sadd.s32 %s96, 1
      %s98 = scalar_select %p95, %s96, %s97
      %p101 = pneg %p95
      %p102 = scmp.eq.s32.totalorder %s18, 1
      %p103 = por %p101, %p102
      %p104 = scmp.ne.s32.totalorder %s96, %s99
      %p105 = scmp.eq.s32.totalorder %s18, 0
      %p106 = por %p104, %p105
      %p107 = scmp.ne.s32.totalorder %s96, %s99
      %p108 = scmp.eq.s32.totalorder %s23, 1
      %p109 = por %p107, %p108
      %p110 = scmp.ne.s32.totalorder %s99, %s100
      %p111 = scmp.eq.s32.totalorder %s23, 0
      %p112 = por %p110, %p111
      %p113 = scmp.ne.s32.totalorder %s99, %s100
      %p114 = scmp.eq.s32.totalorder %s24, 1
      %p115 = por %p113, %p114
      %p117 = scmp.ne.s32.totalorder %s100, %s116
      %p118 = scmp.eq.s32.totalorder %s24, 0
      %p119 = por %p117, %p118
      %s120 = ssub.s32 %s18, %s25
      %p121 = scmp.eq.s32.totalorder %s120, 0
      %s123 = sadd.s32 %s122, 1
      %s124 = scalar_select %p121, %s122, %s123
      %p127 = pneg %p121
      %p128 = scmp.eq.s32.totalorder %s18, 1
      %p129 = por %p127, %p128
      %p130 = scmp.ne.s32.totalorder %s122, %s125
      %p131 = scmp.eq.s32.totalorder %s18, 0
      %p132 = por %p130, %p131
      %p133 = scmp.ne.s32.totalorder %s122, %s125
      %p134 = scmp.eq.s32.totalorder %s23, 1
      %p135 = por %p133, %p134
      %p136 = scmp.ne.s32.totalorder %s125, %s126
      %p137 = scmp.eq.s32.totalorder %s23, 0
      %p138 = por %p136, %p137
      %p139 = scmp.ne.s32.totalorder %s125, %s126
      %p140 = scmp.eq.s32.totalorder %s24, 1
      %p141 = por %p139, %p140
      %p143 = scmp.ne.s32.totalorder %s126, %s142
      %p144 = scmp.eq.s32.totalorder %s24, 0
      %p145 = por %p143, %p144
      %s146 = ssub.s32 %s18, %s25
      %p147 = scmp.eq.s32.totalorder %s146, 0
      %s149 = sadd.s32 %s148, 1
      %s150 = scalar_select %p147, %s148, %s149
      %p153 = pneg %p147
      %p154 = scmp.eq.s32.totalorder %s18, 1
      %p155 = por %p153, %p154
      %p156 = scmp.ne.s32.totalorder %s148, %s151
      %p157 = scmp.eq.s32.totalorder %s18, 0
      %p158 = por %p156, %p157
      %p159 = scmp.ne.s32.totalorder %s148, %s151
      %p160 = scmp.eq.s32.totalorder %s23, 1
      %p161 = por %p159, %p160
      %p162 = scmp.ne.s32.totalorder %s151, %s152
      %p163 = scmp.eq.s32.totalorder %s23, 0
      %p164 = por %p162, %p163
      %p165 = scmp.ne.s32.totalorder %s151, %s152
      %p166 = scmp.eq.s32.totalorder %s24, 1
      %p167 = por %p165, %p166
      %p169 = scmp.ne.s32.totalorder %s152, %s168
      %p170 = scmp.eq.s32.totalorder %s24, 0
      %p171 = por %p169, %p170
      %p172 = scmp.le.s32.totalorder 1, %s18
      %p173 = scmp.lt.s32.totalorder %s18, 3
      %p174 = pnand %p172, %p173
      %p175 = pneg %p174
      // Predicated region
      $region9: #{tpu_custom_call.1} parent=5 // pred_check
        _
      $region10: #{tpu_custom_call.1} parent=5 // pred_check_branch
        %177 = sbr.rel (%p174) target = $region12
      $region11: #{tpu_custom_call.1} parent=5 // pred_region
        %s178 = ssub.s32 %s18, 1
        // Predicated region
        $region13: #{tpu_custom_call.1} parent=11 // pred_check
          %p179 = pneg %p65
        $region14: #{tpu_custom_call.1} parent=11 // pred_check_branch
          %181 = sbr.rel (%p179) target = $region16
        $region15: #{tpu_custom_call.1} parent=11 // pred_region
          _
        $region16: #{tpu_custom_call.1} parent=11 // pred_fallthru
          _
        // Predicated region
        $region17: #{tpu_custom_call.1} parent=11 // pred_check
          %p182 = pneg %p86
        $region18: #{tpu_custom_call.1} parent=11 // pred_check_branch
          %184 = sbr.rel (%p182) target = $region20
        $region19: #{tpu_custom_call.1} parent=11 // pred_region
          _
        $region20: #{tpu_custom_call.1} parent=11 // pred_fallthru
          _
      $region12: #{tpu_custom_call.1} parent=5 // pred_fallthru
        _
      %p185 = scmp.lt.s32.totalorder %s18, 2
      // Predicated region
      $region21: #{tpu_custom_call.1} parent=5 // pred_check
        %p186 = pneg %p185
      $region22: #{tpu_custom_call.1} parent=5 // pred_check_branch
        %188 = sbr.rel (%p186) target = $region24
      $region23: #{tpu_custom_call.1} parent=5 // pred_region
        // Predicated region
        $region25: #{tpu_custom_call.1} parent=23 // pred_check
          %p189 = pneg %p38
        $region26: #{tpu_custom_call.1} parent=23 // pred_check_branch
          %191 = sbr.rel (%p189) target = $region28
        $region27: #{tpu_custom_call.1} parent=23 // pred_region
          %s192 = smul.u32 8, %s18
          %p193 = scmp.lt.s32.totalorder %s192, 15
          %s194 = scalar_select %p193, %s192, 15
          %s195 = smul.addr %s194, 16
          %s196 = smul.addr %s195, 4
          %s197 = scalar_lea.vmem %s0, %s196
          %s198 = smul.u32 8, %s18
        $region28: #{tpu_custom_call.1} parent=23 // pred_fallthru
          _
        // Predicated region
        $region29: #{tpu_custom_call.1} parent=23 // pred_check
          %p199 = pneg %p106
        $region30: #{tpu_custom_call.1} parent=23 // pred_check_branch
          %201 = sbr.rel (%p199) target = $region32
        $region31: #{tpu_custom_call.1} parent=23 // pred_region
          %p202 = scmp.lt.s32.totalorder %s18, 1
          %s203 = scalar_select %p202, %s18, 1
          %s204 = smul.addr %s203, 4
          %s205 = scalar_lea.vmem %s3, %s204
        $region32: #{tpu_custom_call.1} parent=23 // pred_fallthru
          _
      $region24: #{tpu_custom_call.1} parent=5 // pred_fallthru
        _
      %p206 = scmp.le.s32.totalorder 1, %s18
      %p207 = scmp.lt.s32.totalorder %s18, 3
      %p208 = pnand %p206, %p207
      %p209 = pneg %p208
      // Predicated region
      $region33: #{tpu_custom_call.1} parent=5 // pred_check
        _
      $region34: #{tpu_custom_call.1} parent=5 // pred_check_branch
        %211 = sbr.rel (%p208) target = $region36
      $region35: #{tpu_custom_call.1} parent=5 // pred_region
        %s212 = ssub.s32 %s18, 1
        %s213 = smul.u32 8, %s23
        %p214 = scmp.lt.s32.totalorder %s213, 15
        %s215 = scalar_select %p214, %s213, 15
        %s216 = smul.addr %s215, 16
        %s217 = smul.addr %s216, 4
        %s218 = scalar_lea.vmem %s0, %s217
        %p219 = pneg %p44
        %p220 = pneg %p41
        %p221 = pneg %p65
        %p222 = pneg %p62
        %p223 = pneg %p86
        %p224 = pneg %p83
        %p225 = scmp.lt.s32.totalorder %s23, 1
        %s226 = scalar_select %p225, %s23, 1
        %s227 = smul.addr %s226, 4
        %s228 = scalar_lea.vmem %s3, %s227
        %p229 = pneg %p112
        %p230 = pneg %p109
        %p231 = pneg %p138
        %p232 = pneg %p135
        %s233 = sand.u32 %s125, 1
        %s234 = scalar_lea.sflag [#allocation3], %s233
        %s235 = sand.u32 %s125, 1
        %s236 = smul.addr %s235, 8
        %s237 = scalar_lea.vmem [#allocation2], %s236
        %p238 = pneg %p164
        %p239 = pneg %p161
        %s240 = sand.u32 %s151, 1
        %s241 = scalar_lea.sflag [#allocation5], %s240
        %s242 = sand.u32 %s151, 1
        %s243 = smul.addr %s242, 8
        %s244 = scalar_lea.vmem [#allocation4], %s243
        %s245 = smul.u32 8, %s23
        %p246 = scmp.lt.s32.totalorder %s245, 15
        %s247 = scalar_select %p246, %s245, 15
        %s248 = smul.addr %s247, 16
        %s249 = smul.addr %s248, 4
        %s250 = scalar_lea.vmem %s0, %s249
        %s251 = smul.u32 8, %s23
        %p252 = scmp.lt.s32.totalorder %s23, 1
        %s253 = scalar_select %p252, %s23, 1
        %s254 = smul.addr %s253, 4
        %s255 = scalar_lea.vmem %s3, %s254
        %v257 = vld [vmem:[%s250] sm:$0xf]
        %v258 = vld [vmem:[%s250 + $0x4] sm:$0xf]
        %v259 = vld [vmem:[%s250 + $0x8] sm:$0xf]
        %v260 = vld [vmem:[%s250 + $0xc] sm:$0xf]
        %v261 = vld [vmem:[%s250 + $0x10] sm:$0xf]
        %v262 = vld [vmem:[%s250 + $0x14] sm:$0xf]
        %v263 = vld [vmem:[%s250 + $0x18] sm:$0xf]
        %v264 = vld [vmem:[%s250 + $0x1c] sm:$0xf]
        %v265 = vld [vmem:[%s250 + $0x20] sm:$0xf]
        %v266 = vld [vmem:[%s250 + $0x24] sm:$0xf]
        %v267 = vld [vmem:[%s250 + $0x28] sm:$0xf]
        %v268 = vld [vmem:[%s250 + $0x2c] sm:$0xf]
        %v269 = vld [vmem:[%s250 + $0x30] sm:$0xf]
        %v270 = vld [vmem:[%s250 + $0x34] sm:$0xf]
        %v271 = vld [vmem:[%s250 + $0x38] sm:$0xf]
        %v272 = vld [vmem:[%s250 + $0x3c] sm:$0xf]
        %v273 = vld [vmem:[%s250 + $0x40] sm:$0xf]
        %v274 = vld [vmem:[%s250 + $0x44] sm:$0xf]
        %v275 = vld [vmem:[%s250 + $0x48] sm:$0xf]
        %v276 = vld [vmem:[%s250 + $0x4c] sm:$0xf]
        %v277 = vld [vmem:[%s250 + $0x50] sm:$0xf]
        %v278 = vld [vmem:[%s250 + $0x54] sm:$0xf]
        %v279 = vld [vmem:[%s250 + $0x58] sm:$0xf]
        %v280 = vld [vmem:[%s250 + $0x5c] sm:$0xf]
        %v281 = vld [vmem:[%s250 + $0x60] sm:$0xf]
        %v282 = vld [vmem:[%s250 + $0x64] sm:$0xf]
        %v283 = vld [vmem:[%s250 + $0x68] sm:$0xf]
        %v284 = vld [vmem:[%s250 + $0x6c] sm:$0xf]
        %v285 = vld [vmem:[%s250 + $0x70] sm:$0xf]
        %v286 = vld [vmem:[%s250 + $0x74] sm:$0xf]
        %v287 = vld [vmem:[%s250 + $0x78] sm:$0xf]
        %v288 = vld [vmem:[%s250 + $0x7c] sm:$0xf]
        %v289 = vld [vmem:[%s250 + $0x80] sm:$0xf]
        %v290 = vld [vmem:[%s250 + $0x84] sm:$0xf]
        %v291 = vld [vmem:[%s250 + $0x88] sm:$0xf]
        %v292 = vld [vmem:[%s250 + $0x8c] sm:$0xf]
        %v293 = vld [vmem:[%s250 + $0x90] sm:$0xf]
        %v294 = vld [vmem:[%s250 + $0x94] sm:$0xf]
        %v295 = vld [vmem:[%s250 + $0x98] sm:$0xf]
        %v296 = vld [vmem:[%s250 + $0x9c] sm:$0xf]
        %v297 = vld [vmem:[%s250 + $0xa0] sm:$0xf]
        %v298 = vld [vmem:[%s250 + $0xa4] sm:$0xf]
        %v299 = vld [vmem:[%s250 + $0xa8] sm:$0xf]
        %v300 = vld [vmem:[%s250 + $0xac] sm:$0xf]
        %v301 = vld [vmem:[%s250 + $0xb0] sm:$0xf]
        %v302 = vld [vmem:[%s250 + $0xb4] sm:$0xf]
        %v303 = vld [vmem:[%s250 + $0xb8] sm:$0xf]
        %v304 = vld [vmem:[%s250 + $0xbc] sm:$0xf]
        %v305 = vld [vmem:[%s250 + $0xc0] sm:$0xf]
        %v306 = vld [vmem:[%s250 + $0xc4] sm:$0xf]
        %v307 = vld [vmem:[%s250 + $0xc8] sm:$0xf]
        %v308 = vld [vmem:[%s250 + $0xcc] sm:$0xf]
        %v309 = vld [vmem:[%s250 + $0xd0] sm:$0xf]
        %v310 = vld [vmem:[%s250 + $0xd4] sm:$0xf]
        %v311 = vld [vmem:[%s250 + $0xd8] sm:$0xf]
        %v312 = vld [vmem:[%s250 + $0xdc] sm:$0xf]
        %v313 = vld [vmem:[%s250 + $0xe0] sm:$0xf]
        %v314 = vld [vmem:[%s250 + $0xe4] sm:$0xf]
        %v315 = vld [vmem:[%s250 + $0xe8] sm:$0xf]
        %v316 = vld [vmem:[%s250 + $0xec] sm:$0xf]
        %v317 = vld [vmem:[%s250 + $0xf0] sm:$0xf]
        %v318 = vld [vmem:[%s250 + $0xf4] sm:$0xf]
        %v319 = vld [vmem:[%s250 + $0xf8] sm:$0xf]
        %v320 = vld [vmem:[%s250 + $0xfc] sm:$0xf]
        %v321 = vld [vmem:[%s250 + $0x100] sm:$0xf]
        %v322 = vld [vmem:[%s250 + $0x104] sm:$0xf]
        %v323 = vld [vmem:[%s250 + $0x108] sm:$0xf]
        %v324 = vld [vmem:[%s250 + $0x10c] sm:$0xf]
        %v325 = vld [vmem:[%s250 + $0x110] sm:$0xf]
        %v326 = vld [vmem:[%s250 + $0x114] sm:$0xf]
        %v327 = vld [vmem:[%s250 + $0x118] sm:$0xf]
        %v328 = vld [vmem:[%s250 + $0x11c] sm:$0xf]
        %v329 = vld [vmem:[%s250 + $0x120] sm:$0xf]
        %v330 = vld [vmem:[%s250 + $0x124] sm:$0xf]
        %v331 = vld [vmem:[%s250 + $0x128] sm:$0xf]
        %v332 = vld [vmem:[%s250 + $0x12c] sm:$0xf]
        %v333 = vld [vmem:[%s250 + $0x130] sm:$0xf]
        %v334 = vld [vmem:[%s250 + $0x134] sm:$0xf]
        %v335 = vld [vmem:[%s250 + $0x138] sm:$0xf]
        %v336 = vld [vmem:[%s250 + $0x13c] sm:$0xf]
        %v337 = vld [vmem:[%s250 + $0x140] sm:$0xf]
        %v338 = vld [vmem:[%s250 + $0x144] sm:$0xf]
        %v339 = vld [vmem:[%s250 + $0x148] sm:$0xf]
        %v340 = vld [vmem:[%s250 + $0x14c] sm:$0xf]
        %v341 = vld [vmem:[%s250 + $0x150] sm:$0xf]
        %v342 = vld [vmem:[%s250 + $0x154] sm:$0xf]
        %v343 = vld [vmem:[%s250 + $0x158] sm:$0xf]
        %v344 = vld [vmem:[%s250 + $0x15c] sm:$0xf]
        %v345 = vld [vmem:[%s250 + $0x160] sm:$0xf]
        %v346 = vld [vmem:[%s250 + $0x164] sm:$0xf]
        %v347 = vld [vmem:[%s250 + $0x168] sm:$0xf]
        %v348 = vld [vmem:[%s250 + $0x16c] sm:$0xf]
        %v349 = vld [vmem:[%s250 + $0x170] sm:$0xf]
        %v350 = vld [vmem:[%s250 + $0x174] sm:$0xf]
        %v351 = vld [vmem:[%s250 + $0x178] sm:$0xf]
        %v352 = vld [vmem:[%s250 + $0x17c] sm:$0xf]
        %v353 = vld [vmem:[%s250 + $0x180] sm:$0xf]
        %v354 = vld [vmem:[%s250 + $0x184] sm:$0xf]
        %v355 = vld [vmem:[%s250 + $0x188] sm:$0xf]
        %v356 = vld [vmem:[%s250 + $0x18c] sm:$0xf]
        %v357 = vld [vmem:[%s250 + $0x190] sm:$0xf]
        %v358 = vld [vmem:[%s250 + $0x194] sm:$0xf]
        %v359 = vld [vmem:[%s250 + $0x198] sm:$0xf]
        %v360 = vld [vmem:[%s250 + $0x19c] sm:$0xf]
        %v361 = vld [vmem:[%s250 + $0x1a0] sm:$0xf]
        %v362 = vld [vmem:[%s250 + $0x1a4] sm:$0xf]
        %v363 = vld [vmem:[%s250 + $0x1a8] sm:$0xf]
        %v364 = vld [vmem:[%s250 + $0x1ac] sm:$0xf]
        %v365 = vld [vmem:[%s250 + $0x1b0] sm:$0xf]
        %v366 = vld [vmem:[%s250 + $0x1b4] sm:$0xf]
        %v367 = vld [vmem:[%s250 + $0x1b8] sm:$0xf]
        %v368 = vld [vmem:[%s250 + $0x1bc] sm:$0xf]
        %v369 = vld [vmem:[%s250 + $0x1c0] sm:$0xf]
        %v370 = vld [vmem:[%s250 + $0x1c4] sm:$0xf]
        %v371 = vld [vmem:[%s250 + $0x1c8] sm:$0xf]
        %v372 = vld [vmem:[%s250 + $0x1cc] sm:$0xf]
        %v373 = vld [vmem:[%s250 + $0x1d0] sm:$0xf]
        %v374 = vld [vmem:[%s250 + $0x1d4] sm:$0xf]
        %v375 = vld [vmem:[%s250 + $0x1d8] sm:$0xf]
        %v376 = vld [vmem:[%s250 + $0x1dc] sm:$0xf]
        %v377 = vld [vmem:[%s250 + $0x1e0] sm:$0xf]
        %v378 = vld [vmem:[%s250 + $0x1e4] sm:$0xf]
        %v379 = vld [vmem:[%s250 + $0x1e8] sm:$0xf]
        %v380 = vld [vmem:[%s250 + $0x1ec] sm:$0xf]
        %v381 = vld [vmem:[%s250 + $0x1f0] sm:$0xf]
        %v382 = vld [vmem:[%s250 + $0x1f4] sm:$0xf]
        %v383 = vld [vmem:[%s250 + $0x1f8] sm:$0xf]
        %v384 = vld [vmem:[%s250 + $0x1fc] sm:$0xf]
        %v385 = vld [vmem:[%s1] sm:$0xf]
        %v386 = vld [vmem:[%s1 + $0x4] sm:$0xf]
        %v387 = vld [vmem:[%s1 + $0x8] sm:$0xf]
        %v388 = vld [vmem:[%s1 + $0xc] sm:$0xf]
        %v389 = vld [vmem:[%s2] sm:$0x1]
        %v391 = vperm.slane %v389, 0
        %v521 = vunpack.c.l.b16 %v257
        %v522 = vunpack.c.l.b16 %v258
        %v523 = vunpack.c.l.b16 %v259
        %v524 = vunpack.c.l.b16 %v260
        %v525 = vunpack.c.l.b16 %v261
        %v526 = vunpack.c.l.b16 %v262
        %v527 = vunpack.c.l.b16 %v263
        %v528 = vunpack.c.l.b16 %v264
        %v529 = vunpack.c.l.b16 %v265
        %v530 = vunpack.c.l.b16 %v266
        %v531 = vunpack.c.l.b16 %v267
        %v532 = vunpack.c.l.b16 %v268
        %v533 = vunpack.c.l.b16 %v269
        %v534 = vunpack.c.l.b16 %v270
        %v535 = vunpack.c.l.b16 %v271
        %v536 = vunpack.c.l.b16 %v272
        %v537 = vunpack.c.l.b16 %v273
        %v538 = vunpack.c.l.b16 %v274
        %v539 = vunpack.c.l.b16 %v275
        %v540 = vunpack.c.l.b16 %v276
        %v541 = vunpack.c.l.b16 %v277
        %v542 = vunpack.c.l.b16 %v278
        %v543 = vunpack.c.l.b16 %v279
        %v544 = vunpack.c.l.b16 %v280
        %v545 = vunpack.c.l.b16 %v281
        %v546 = vunpack.c.l.b16 %v282
        %v547 = vunpack.c.l.b16 %v283
        %v548 = vunpack.c.l.b16 %v284
        %v549 = vunpack.c.l.b16 %v285
        %v550 = vunpack.c.l.b16 %v286
        %v551 = vunpack.c.l.b16 %v287
        %v552 = vunpack.c.l.b16 %v288
        %v553 = vunpack.c.l.b16 %v289
        %v554 = vunpack.c.l.b16 %v290
        %v555 = vunpack.c.l.b16 %v291
        %v556 = vunpack.c.l.b16 %v292
        %v557 = vunpack.c.l.b16 %v293
        %v558 = vunpack.c.l.b16 %v294
        %v559 = vunpack.c.l.b16 %v295
        %v560 = vunpack.c.l.b16 %v296
        %v561 = vunpack.c.l.b16 %v297
        %v562 = vunpack.c.l.b16 %v298
        %v563 = vunpack.c.l.b16 %v299
        %v564 = vunpack.c.l.b16 %v300
        %v565 = vunpack.c.l.b16 %v301
        %v566 = vunpack.c.l.b16 %v302
        %v567 = vunpack.c.l.b16 %v303
        %v568 = vunpack.c.l.b16 %v304
        %v569 = vunpack.c.l.b16 %v305
        %v570 = vunpack.c.l.b16 %v306
        %v571 = vunpack.c.l.b16 %v307
        %v572 = vunpack.c.l.b16 %v308
        %v573 = vunpack.c.l.b16 %v309
        %v574 = vunpack.c.l.b16 %v310
        %v575 = vunpack.c.l.b16 %v311
        %v576 = vunpack.c.l.b16 %v312
        %v577 = vunpack.c.l.b16 %v313
        %v578 = vunpack.c.l.b16 %v314
        %v579 = vunpack.c.l.b16 %v315
        %v580 = vunpack.c.l.b16 %v316
        %v581 = vunpack.c.l.b16 %v317
        %v582 = vunpack.c.l.b16 %v318
        %v583 = vunpack.c.l.b16 %v319
        %v584 = vunpack.c.l.b16 %v320
        %v585 = vunpack.c.l.b16 %v321
        %v586 = vunpack.c.l.b16 %v322
        %v587 = vunpack.c.l.b16 %v323
        %v588 = vunpack.c.l.b16 %v324
        %v589 = vunpack.c.l.b16 %v325
        %v590 = vunpack.c.l.b16 %v326
        %v591 = vunpack.c.l.b16 %v327
        %v592 = vunpack.c.l.b16 %v328
        %v593 = vunpack.c.l.b16 %v329
        %v594 = vunpack.c.l.b16 %v330
        %v595 = vunpack.c.l.b16 %v331
        %v596 = vunpack.c.l.b16 %v332
        %v597 = vunpack.c.l.b16 %v333
        %v598 = vunpack.c.l.b16 %v334
        %v599 = vunpack.c.l.b16 %v335
        %v600 = vunpack.c.l.b16 %v336
        %v601 = vunpack.c.l.b16 %v337
        %v602 = vunpack.c.l.b16 %v338
        %v603 = vunpack.c.l.b16 %v339
        %v604 = vunpack.c.l.b16 %v340
        %v605 = vunpack.c.l.b16 %v341
        %v606 = vunpack.c.l.b16 %v342
        %v607 = vunpack.c.l.b16 %v343
        %v608 = vunpack.c.l.b16 %v344
        %v609 = vunpack.c.l.b16 %v345
        %v610 = vunpack.c.l.b16 %v346
        %v611 = vunpack.c.l.b16 %v347
        %v612 = vunpack.c.l.b16 %v348
        %v613 = vunpack.c.l.b16 %v349
        %v614 = vunpack.c.l.b16 %v350
        %v615 = vunpack.c.l.b16 %v351
        %v616 = vunpack.c.l.b16 %v352
        %v617 = vunpack.c.l.b16 %v353
        %v618 = vunpack.c.l.b16 %v354
        %v619 = vunpack.c.l.b16 %v355
        %v620 = vunpack.c.l.b16 %v356
        %v621 = vunpack.c.l.b16 %v357
        %v622 = vunpack.c.l.b16 %v358
        %v623 = vunpack.c.l.b16 %v359
        %v624 = vunpack.c.l.b16 %v360
        %v625 = vunpack.c.l.b16 %v361
        %v626 = vunpack.c.l.b16 %v362
        %v627 = vunpack.c.l.b16 %v363
        %v628 = vunpack.c.l.b16 %v364
        %v629 = vunpack.c.l.b16 %v365
        %v630 = vunpack.c.l.b16 %v366
        %v631 = vunpack.c.l.b16 %v367
        %v632 = vunpack.c.l.b16 %v368
        %v633 = vunpack.c.l.b16 %v369
        %v634 = vunpack.c.l.b16 %v370
        %v635 = vunpack.c.l.b16 %v371
        %v636 = vunpack.c.l.b16 %v372
        %v637 = vunpack.c.l.b16 %v373
        %v638 = vunpack.c.l.b16 %v374
        %v639 = vunpack.c.l.b16 %v375
        %v640 = vunpack.c.l.b16 %v376
        %v641 = vunpack.c.l.b16 %v377
        %v642 = vunpack.c.l.b16 %v378
        %v643 = vunpack.c.l.b16 %v379
        %v644 = vunpack.c.l.b16 %v380
        %v645 = vunpack.c.l.b16 %v381
        %v646 = vunpack.c.l.b16 %v382
        %v647 = vunpack.c.l.b16 %v383
        %v648 = vunpack.c.l.b16 %v384
        %v649 = vpack.c.b16 %v522, %v521
        %v650 = vpack.c.b16 %v524, %v523
        %v651 = vpack.c.b16 %v526, %v525
        %v652 = vpack.c.b16 %v528, %v527
        %v653 = vpack.c.b16 %v530, %v529
        %v654 = vpack.c.b16 %v532, %v531
        %v655 = vpack.c.b16 %v534, %v533
        %v656 = vpack.c.b16 %v536, %v535
        %v657 = vpack.c.b16 %v538, %v537
        %v658 = vpack.c.b16 %v540, %v539
        %v659 = vpack.c.b16 %v542, %v541
        %v660 = vpack.c.b16 %v544, %v543
        %v661 = vpack.c.b16 %v546, %v545
        %v662 = vpack.c.b16 %v548, %v547
        %v663 = vpack.c.b16 %v550, %v549
        %v664 = vpack.c.b16 %v552, %v551
        %v665 = vpack.c.b16 %v554, %v553
        %v666 = vpack.c.b16 %v556, %v555
        %v667 = vpack.c.b16 %v558, %v557
        %v668 = vpack.c.b16 %v560, %v559
        %v669 = vpack.c.b16 %v562, %v561
        %v670 = vpack.c.b16 %v564, %v563
        %v671 = vpack.c.b16 %v566, %v565
        %v672 = vpack.c.b16 %v568, %v567
        %v673 = vpack.c.b16 %v570, %v569
        %v674 = vpack.c.b16 %v572, %v571
        %v675 = vpack.c.b16 %v574, %v573
        %v676 = vpack.c.b16 %v576, %v575
        %v677 = vpack.c.b16 %v578, %v577
        %v678 = vpack.c.b16 %v580, %v579
        %v679 = vpack.c.b16 %v582, %v581
        %v680 = vpack.c.b16 %v584, %v583
        %v681 = vpack.c.b16 %v586, %v585
        %v682 = vpack.c.b16 %v588, %v587
        %v683 = vpack.c.b16 %v590, %v589
        %v684 = vpack.c.b16 %v592, %v591
        %v685 = vpack.c.b16 %v594, %v593
        %v686 = vpack.c.b16 %v596, %v595
        %v687 = vpack.c.b16 %v598, %v597
        %v688 = vpack.c.b16 %v600, %v599
        %v689 = vpack.c.b16 %v602, %v601
        %v690 = vpack.c.b16 %v604, %v603
        %v691 = vpack.c.b16 %v606, %v605
        %v692 = vpack.c.b16 %v608, %v607
        %v693 = vpack.c.b16 %v610, %v609
        %v694 = vpack.c.b16 %v612, %v611
        %v695 = vpack.c.b16 %v614, %v613
        %v696 = vpack.c.b16 %v616, %v615
        %v697 = vpack.c.b16 %v618, %v617
        %v698 = vpack.c.b16 %v620, %v619
        %v699 = vpack.c.b16 %v622, %v621
        %v700 = vpack.c.b16 %v624, %v623
        %v701 = vpack.c.b16 %v626, %v625
        %v702 = vpack.c.b16 %v628, %v627
        %v703 = vpack.c.b16 %v630, %v629
        %v704 = vpack.c.b16 %v632, %v631
        %v705 = vpack.c.b16 %v634, %v633
        %v706 = vpack.c.b16 %v636, %v635
        %v707 = vpack.c.b16 %v638, %v637
        %v708 = vpack.c.b16 %v640, %v639
        %v709 = vpack.c.b16 %v642, %v641
        %v710 = vpack.c.b16 %v644, %v643
        %v711 = vpack.c.b16 %v646, %v645
        %v712 = vpack.c.b16 %v648, %v647
        %v717 = vunpack.c.l.b16 %v385
        %v718 = vunpack.c.l.b16 %v386
        %v719 = vunpack.c.l.b16 %v387
        %v720 = vunpack.c.l.b16 %v388
        %v721 = vpack.c.b16 %v718, %v717
        %v722 = vpack.c.b16 %v720, %v719
        %vm725 = vcmask 261120
        %v727 = vsel %vm725, %v649, 0
        %v730 = vsel %vm725, %v650, 0
        %v733 = vsel %vm725, %v651, 0
        %v736 = vsel %vm725, %v652, 0
        %v739 = vsel %vm725, %v653, 0
        %v742 = vsel %vm725, %v654, 0
        %v745 = vsel %vm725, %v655, 0
        %v748 = vsel %vm725, %v656, 0
        %v751 = vsel %vm725, %v657, 0
        %v754 = vsel %vm725, %v658, 0
        %v757 = vsel %vm725, %v659, 0
        %v760 = vsel %vm725, %v660, 0
        %v763 = vsel %vm725, %v661, 0
        %v766 = vsel %vm725, %v662, 0
        %v769 = vsel %vm725, %v663, 0
        %v772 = vsel %vm725, %v664, 0
        %v775 = vsel %vm725, %v665, 0
        %v778 = vsel %vm725, %v666, 0
        %v781 = vsel %vm725, %v667, 0
        %v784 = vsel %vm725, %v668, 0
        %v787 = vsel %vm725, %v669, 0
        %v790 = vsel %vm725, %v670, 0
        %v793 = vsel %vm725, %v671, 0
        %v796 = vsel %vm725, %v672, 0
        %v799 = vsel %vm725, %v673, 0
        %v802 = vsel %vm725, %v674, 0
        %v805 = vsel %vm725, %v675, 0
        %v808 = vsel %vm725, %v676, 0
        %v811 = vsel %vm725, %v677, 0
        %v814 = vsel %vm725, %v678, 0
        %v817 = vsel %vm725, %v679, 0
        %v820 = vsel %vm725, %v680, 0
        %v823 = vsel %vm725, %v681, 0
        %v826 = vsel %vm725, %v682, 0
        %v829 = vsel %vm725, %v683, 0
        %v832 = vsel %vm725, %v684, 0
        %v835 = vsel %vm725, %v685, 0
        %v838 = vsel %vm725, %v686, 0
        %v841 = vsel %vm725, %v687, 0
        %v844 = vsel %vm725, %v688, 0
        %v847 = vsel %vm725, %v689, 0
        %v850 = vsel %vm725, %v690, 0
        %v853 = vsel %vm725, %v691, 0
        %v856 = vsel %vm725, %v692, 0
        %v859 = vsel %vm725, %v693, 0
        %v862 = vsel %vm725, %v694, 0
        %v865 = vsel %vm725, %v695, 0
        %v868 = vsel %vm725, %v696, 0
        %v871 = vsel %vm725, %v697, 0
        %v874 = vsel %vm725, %v698, 0
        %v877 = vsel %vm725, %v699, 0
        %v880 = vsel %vm725, %v700, 0
        %v883 = vsel %vm725, %v701, 0
        %v886 = vsel %vm725, %v702, 0
        %v889 = vsel %vm725, %v703, 0
        %v892 = vsel %vm725, %v704, 0
        %v895 = vsel %vm725, %v705, 0
        %v898 = vsel %vm725, %v706, 0
        %v901 = vsel %vm725, %v707, 0
        %v904 = vsel %vm725, %v708, 0
        %v907 = vsel %vm725, %v709, 0
        %v910 = vsel %vm725, %v710, 0
        %v913 = vsel %vm725, %v711, 0
        %v916 = vsel %vm725, %v712, 0
        %918 = vmatpush.bf16.msra.mxu0 0
        %919 = vmatpush.bf16.msra.mxu0 0
        %920 = vmatpush.bf16.msra.mxu0 0
        %921 = vmatpush.bf16.msra.mxu0 0
        %922 = vmatpush.bf16.msra.mxu0 0
        %923 = vmatpush.bf16.msra.mxu0 0
        %924 = vmatpush.bf16.msra.mxu0 %v722
        %925 = vmatpush.bf16.msra.mxu0 %v721
        %926 = vmatmul.bf16.gmra.mxu0 %v727
        %v927 = vpop.f32.mrf.mxu0
        %v928 = vadd.f32 %v391, %v927
        %v929 = vpop.f32.mrf.mxu0
        %v930 = vadd.f32 %v391, %v929
        %931 = vmatmul.bf16.gmra.mxu0 %v730
        %v932 = vpop.f32.mrf.mxu0
        %v933 = vadd.f32 %v391, %v932
        %v934 = vpop.f32.mrf.mxu0
        %v935 = vadd.f32 %v391, %v934
        %936 = vmatmul.bf16.gmra.mxu0 %v733
        %v937 = vpop.f32.mrf.mxu0
        %v938 = vadd.f32 %v391, %v937
        %v939 = vpop.f32.mrf.mxu0
        %v940 = vadd.f32 %v391, %v939
        %941 = vmatmul.bf16.gmra.mxu0 %v736
        %v942 = vpop.f32.mrf.mxu0
        %v943 = vadd.f32 %v391, %v942
        %v944 = vpop.f32.mrf.mxu0
        %v945 = vadd.f32 %v391, %v944
        %946 = vmatmul.bf16.gmra.mxu0 %v739
        %v947 = vpop.f32.mrf.mxu0
        %v948 = vadd.f32 %v391, %v947
        %v949 = vpop.f32.mrf.mxu0
        %v950 = vadd.f32 %v391, %v949
        %951 = vmatmul.bf16.gmra.mxu0 %v742
        %v952 = vpop.f32.mrf.mxu0
        %v953 = vadd.f32 %v391, %v952
        %v954 = vpop.f32.mrf.mxu0
        %v955 = vadd.f32 %v391, %v954
        %956 = vmatmul.bf16.gmra.mxu0 %v745
        %v957 = vpop.f32.mrf.mxu0
        %v958 = vadd.f32 %v391, %v957
        %v959 = vpop.f32.mrf.mxu0
        %v960 = vadd.f32 %v391, %v959
        %961 = vmatmul.bf16.gmra.mxu0 %v748
        %v962 = vpop.f32.mrf.mxu0
        %v963 = vadd.f32 %v391, %v962
        %v964 = vpop.f32.mrf.mxu0
        %v965 = vadd.f32 %v391, %v964
        %966 = vmatmul.bf16.gmra.mxu0 %v751
        %v967 = vpop.f32.mrf.mxu0
        %v968 = vadd.f32 %v391, %v967
        %v969 = vpop.f32.mrf.mxu0
        %v970 = vadd.f32 %v391, %v969
        %971 = vmatmul.bf16.gmra.mxu0 %v754
        %v972 = vpop.f32.mrf.mxu0
        %v973 = vadd.f32 %v391, %v972
        %v974 = vpop.f32.mrf.mxu0
        %v975 = vadd.f32 %v391, %v974
        %976 = vmatmul.bf16.gmra.mxu0 %v757
        %v977 = vpop.f32.mrf.mxu0
        %v978 = vadd.f32 %v391, %v977
        %v979 = vpop.f32.mrf.mxu0
        %v980 = vadd.f32 %v391, %v979
        %981 = vmatmul.bf16.gmra.mxu0 %v760
        %v982 = vpop.f32.mrf.mxu0
        %v983 = vadd.f32 %v391, %v982
        %v984 = vpop.f32.mrf.mxu0
        %v985 = vadd.f32 %v391, %v984
        %986 = vmatmul.bf16.gmra.mxu0 %v763
        %v987 = vpop.f32.mrf.mxu0
        %v988 = vadd.f32 %v391, %v987
        %v989 = vpop.f32.mrf.mxu0
        %v990 = vadd.f32 %v391, %v989
        %991 = vmatmul.bf16.gmra.mxu0 %v766
        %v992 = vpop.f32.mrf.mxu0
        %v993 = vadd.f32 %v391, %v992
        %v994 = vpop.f32.mrf.mxu0
        %v995 = vadd.f32 %v391, %v994
        %996 = vmatmul.bf16.gmra.mxu0 %v769
        %v997 = vpop.f32.mrf.mxu0
        %v998 = vadd.f32 %v391, %v997
        %v999 = vpop.f32.mrf.mxu0
        %v1000 = vadd.f32 %v391, %v999
        %1001 = vmatmul.bf16.gmra.mxu0 %v772
        %v1002 = vpop.f32.mrf.mxu0
        %v1003 = vadd.f32 %v391, %v1002
        %v1004 = vpop.f32.mrf.mxu0
        %v1005 = vadd.f32 %v391, %v1004
        %1006 = vmatmul.bf16.gmra.mxu0 %v775
        %v1007 = vpop.f32.mrf.mxu0
        %v1008 = vadd.f32 %v391, %v1007
        %v1009 = vpop.f32.mrf.mxu0
        %v1010 = vadd.f32 %v391, %v1009
        %1011 = vmatmul.bf16.gmra.mxu0 %v778
        %v1012 = vpop.f32.mrf.mxu0
        %v1013 = vadd.f32 %v391, %v1012
        %v1014 = vpop.f32.mrf.mxu0
        %v1015 = vadd.f32 %v391, %v1014
        %1016 = vmatmul.bf16.gmra.mxu0 %v781
        %v1017 = vpop.f32.mrf.mxu0
        %v1018 = vadd.f32 %v391, %v1017
        %v1019 = vpop.f32.mrf.mxu0
        %v1020 = vadd.f32 %v391, %v1019
        %1021 = vmatmul.bf16.gmra.mxu0 %v784
        %v1022 = vpop.f32.mrf.mxu0
        %v1023 = vadd.f32 %v391, %v1022
        %v1024 = vpop.f32.mrf.mxu0
        %v1025 = vadd.f32 %v391, %v1024
        %1026 = vmatmul.bf16.gmra.mxu0 %v787
        %v1027 = vpop.f32.mrf.mxu0
        %v1028 = vadd.f32 %v391, %v1027
        %v1029 = vpop.f32.mrf.mxu0
        %v1030 = vadd.f32 %v391, %v1029
        %1031 = vmatmul.bf16.gmra.mxu0 %v790
        %v1032 = vpop.f32.mrf.mxu0
        %v1033 = vadd.f32 %v391, %v1032
        %v1034 = vpop.f32.mrf.mxu0
        %v1035 = vadd.f32 %v391, %v1034
        %1036 = vmatmul.bf16.gmra.mxu0 %v793
        %v1037 = vpop.f32.mrf.mxu0
        %v1038 = vadd.f32 %v391, %v1037
        %v1039 = vpop.f32.mrf.mxu0
        %v1040 = vadd.f32 %v391, %v1039
        %1041 = vmatmul.bf16.gmra.mxu0 %v796
        %v1042 = vpop.f32.mrf.mxu0
        %v1043 = vadd.f32 %v391, %v1042
        %v1044 = vpop.f32.mrf.mxu0
        %v1045 = vadd.f32 %v391, %v1044
        %1046 = vmatmul.bf16.gmra.mxu0 %v799
        %v1047 = vpop.f32.mrf.mxu0
        %v1048 = vadd.f32 %v391, %v1047
        %v1049 = vpop.f32.mrf.mxu0
        %v1050 = vadd.f32 %v391, %v1049
        %1051 = vmatmul.bf16.gmra.mxu0 %v802
        %v1052 = vpop.f32.mrf.mxu0
        %v1053 = vadd.f32 %v391, %v1052
        %v1054 = vpop.f32.mrf.mxu0
        %v1055 = vadd.f32 %v391, %v1054
        %1056 = vmatmul.bf16.gmra.mxu0 %v805
        %v1057 = vpop.f32.mrf.mxu0
        %v1058 = vadd.f32 %v391, %v1057
        %v1059 = vpop.f32.mrf.mxu0
        %v1060 = vadd.f32 %v391, %v1059
        %1061 = vmatmul.bf16.gmra.mxu0 %v808
        %v1062 = vpop.f32.mrf.mxu0
        %v1063 = vadd.f32 %v391, %v1062
        %v1064 = vpop.f32.mrf.mxu0
        %v1065 = vadd.f32 %v391, %v1064
        %1066 = vmatmul.bf16.gmra.mxu0 %v811
        %v1067 = vpop.f32.mrf.mxu0
        %v1068 = vadd.f32 %v391, %v1067
        %v1069 = vpop.f32.mrf.mxu0
        %v1070 = vadd.f32 %v391, %v1069
        %1071 = vmatmul.bf16.gmra.mxu0 %v814
        %v1072 = vpop.f32.mrf.mxu0
        %v1073 = vadd.f32 %v391, %v1072
        %v1074 = vpop.f32.mrf.mxu0
        %v1075 = vadd.f32 %v391, %v1074
        %1076 = vmatmul.bf16.gmra.mxu0 %v817
        %v1077 = vpop.f32.mrf.mxu0
        %v1078 = vadd.f32 %v391, %v1077
        %v1079 = vpop.f32.mrf.mxu0
        %v1080 = vadd.f32 %v391, %v1079
        %1081 = vmatmul.bf16.gmra.mxu0 %v820
        %v1082 = vpop.f32.mrf.mxu0
        %v1083 = vadd.f32 %v391, %v1082
        %v1084 = vpop.f32.mrf.mxu0
        %v1085 = vadd.f32 %v391, %v1084
        %1086 = vmatmul.bf16.gmra.mxu0 %v823
        %v1087 = vpop.f32.mrf.mxu0
        %v1088 = vadd.f32 %v391, %v1087
        %v1089 = vpop.f32.mrf.mxu0
        %v1090 = vadd.f32 %v391, %v1089
        %1091 = vmatmul.bf16.gmra.mxu0 %v826
        %v1092 = vpop.f32.mrf.mxu0
        %v1093 = vadd.f32 %v391, %v1092
        %v1094 = vpop.f32.mrf.mxu0
        %v1095 = vadd.f32 %v391, %v1094
        %1096 = vmatmul.bf16.gmra.mxu0 %v829
        %v1097 = vpop.f32.mrf.mxu0
        %v1098 = vadd.f32 %v391, %v1097
        %v1099 = vpop.f32.mrf.mxu0
        %v1100 = vadd.f32 %v391, %v1099
        %1101 = vmatmul.bf16.gmra.mxu0 %v832
        %v1102 = vpop.f32.mrf.mxu0
        %v1103 = vadd.f32 %v391, %v1102
        %v1104 = vpop.f32.mrf.mxu0
        %v1105 = vadd.f32 %v391, %v1104
        %1106 = vmatmul.bf16.gmra.mxu0 %v835
        %v1107 = vpop.f32.mrf.mxu0
        %v1108 = vadd.f32 %v391, %v1107
        %v1109 = vpop.f32.mrf.mxu0
        %v1110 = vadd.f32 %v391, %v1109
        %1111 = vmatmul.bf16.gmra.mxu0 %v838
        %v1112 = vpop.f32.mrf.mxu0
        %v1113 = vadd.f32 %v391, %v1112
        %v1114 = vpop.f32.mrf.mxu0
        %v1115 = vadd.f32 %v391, %v1114
        %1116 = vmatmul.bf16.gmra.mxu0 %v841
        %v1117 = vpop.f32.mrf.mxu0
        %v1118 = vadd.f32 %v391, %v1117
        %v1119 = vpop.f32.mrf.mxu0
        %v1120 = vadd.f32 %v391, %v1119
        %1121 = vmatmul.bf16.gmra.mxu0 %v844
        %v1122 = vpop.f32.mrf.mxu0
        %v1123 = vadd.f32 %v391, %v1122
        %v1124 = vpop.f32.mrf.mxu0
        %v1125 = vadd.f32 %v391, %v1124
        %1126 = vmatmul.bf16.gmra.mxu0 %v847
        %v1127 = vpop.f32.mrf.mxu0
        %v1128 = vadd.f32 %v391, %v1127
        %v1129 = vpop.f32.mrf.mxu0
        %v1130 = vadd.f32 %v391, %v1129
        %1131 = vmatmul.bf16.gmra.mxu0 %v850
        %v1132 = vpop.f32.mrf.mxu0
        %v1133 = vadd.f32 %v391, %v1132
        %v1134 = vpop.f32.mrf.mxu0
        %v1135 = vadd.f32 %v391, %v1134
        %1136 = vmatmul.bf16.gmra.mxu0 %v853
        %v1137 = vpop.f32.mrf.mxu0
        %v1138 = vadd.f32 %v391, %v1137
        %v1139 = vpop.f32.mrf.mxu0
        %v1140 = vadd.f32 %v391, %v1139
        %1141 = vmatmul.bf16.gmra.mxu0 %v856
        %v1142 = vpop.f32.mrf.mxu0
        %v1143 = vadd.f32 %v391, %v1142
        %v1144 = vpop.f32.mrf.mxu0
        %v1145 = vadd.f32 %v391, %v1144
        %1146 = vmatmul.bf16.gmra.mxu0 %v859
        %v1147 = vpop.f32.mrf.mxu0
        %v1148 = vadd.f32 %v391, %v1147
        %v1149 = vpop.f32.mrf.mxu0
        %v1150 = vadd.f32 %v391, %v1149
        %1151 = vmatmul.bf16.gmra.mxu0 %v862
        %v1152 = vpop.f32.mrf.mxu0
        %v1153 = vadd.f32 %v391, %v1152
        %v1154 = vpop.f32.mrf.mxu0
        %v1155 = vadd.f32 %v391, %v1154
        %1156 = vmatmul.bf16.gmra.mxu0 %v865
        %v1157 = vpop.f32.mrf.mxu0
        %v1158 = vadd.f32 %v391, %v1157
        %v1159 = vpop.f32.mrf.mxu0
        %v1160 = vadd.f32 %v391, %v1159
        %1161 = vmatmul.bf16.gmra.mxu0 %v868
        %v1162 = vpop.f32.mrf.mxu0
        %v1163 = vadd.f32 %v391, %v1162
        %v1164 = vpop.f32.mrf.mxu0
        %v1165 = vadd.f32 %v391, %v1164
        %1166 = vmatmul.bf16.gmra.mxu0 %v871
        %v1167 = vpop.f32.mrf.mxu0
        %v1168 = vadd.f32 %v391, %v1167
        %v1169 = vpop.f32.mrf.mxu0
        %v1170 = vadd.f32 %v391, %v1169
        %1171 = vmatmul.bf16.gmra.mxu0 %v874
        %v1172 = vpop.f32.mrf.mxu0
        %v1173 = vadd.f32 %v391, %v1172
        %v1174 = vpop.f32.mrf.mxu0
        %v1175 = vadd.f32 %v391, %v1174
        %1176 = vmatmul.bf16.gmra.mxu0 %v877
        %v1177 = vpop.f32.mrf.mxu0
        %v1178 = vadd.f32 %v391, %v1177
        %v1179 = vpop.f32.mrf.mxu0
        %v1180 = vadd.f32 %v391, %v1179
        %1181 = vmatmul.bf16.gmra.mxu0 %v880
        %v1182 = vpop.f32.mrf.mxu0
        %v1183 = vadd.f32 %v391, %v1182
        %v1184 = vpop.f32.mrf.mxu0
        %v1185 = vadd.f32 %v391, %v1184
        %1186 = vmatmul.bf16.gmra.mxu0 %v883
        %v1187 = vpop.f32.mrf.mxu0
        %v1188 = vadd.f32 %v391, %v1187
        %v1189 = vpop.f32.mrf.mxu0
        %v1190 = vadd.f32 %v391, %v1189
        %1191 = vmatmul.bf16.gmra.mxu0 %v886
        %v1192 = vpop.f32.mrf.mxu0
        %v1193 = vadd.f32 %v391, %v1192
        %v1194 = vpop.f32.mrf.mxu0
        %v1195 = vadd.f32 %v391, %v1194
        %1196 = vmatmul.bf16.gmra.mxu0 %v889
        %v1197 = vpop.f32.mrf.mxu0
        %v1198 = vadd.f32 %v391, %v1197
        %v1199 = vpop.f32.mrf.mxu0
        %v1200 = vadd.f32 %v391, %v1199
        %1201 = vmatmul.bf16.gmra.mxu0 %v892
        %v1202 = vpop.f32.mrf.mxu0
        %v1203 = vadd.f32 %v391, %v1202
        %v1204 = vpop.f32.mrf.mxu0
        %v1205 = vadd.f32 %v391, %v1204
        %1206 = vmatmul.bf16.gmra.mxu0 %v895
        %v1207 = vpop.f32.mrf.mxu0
        %v1208 = vadd.f32 %v391, %v1207
        %v1209 = vpop.f32.mrf.mxu0
        %v1210 = vadd.f32 %v391, %v1209
        %1211 = vmatmul.bf16.gmra.mxu0 %v898
        %v1212 = vpop.f32.mrf.mxu0
        %v1213 = vadd.f32 %v391, %v1212
        %v1214 = vpop.f32.mrf.mxu0
        %v1215 = vadd.f32 %v391, %v1214
        %1216 = vmatmul.bf16.gmra.mxu0 %v901
        %v1217 = vpop.f32.mrf.mxu0
        %v1218 = vadd.f32 %v391, %v1217
        %v1219 = vpop.f32.mrf.mxu0
        %v1220 = vadd.f32 %v391, %v1219
        %1221 = vmatmul.bf16.gmra.mxu0 %v904
        %v1222 = vpop.f32.mrf.mxu0
        %v1223 = vadd.f32 %v391, %v1222
        %v1224 = vpop.f32.mrf.mxu0
        %v1225 = vadd.f32 %v391, %v1224
        %1226 = vmatmul.bf16.gmra.mxu0 %v907
        %v1227 = vpop.f32.mrf.mxu0
        %v1228 = vadd.f32 %v391, %v1227
        %v1229 = vpop.f32.mrf.mxu0
        %v1230 = vadd.f32 %v391, %v1229
        %1231 = vmatmul.bf16.gmra.mxu0 %v910
        %v1232 = vpop.f32.mrf.mxu0
        %v1233 = vadd.f32 %v391, %v1232
        %v1234 = vpop.f32.mrf.mxu0
        %v1235 = vadd.f32 %v391, %v1234
        %1236 = vmatmul.bf16.gmra.mxu0 %v913
        %v1237 = vpop.f32.mrf.mxu0
        %v1238 = vadd.f32 %v391, %v1237
        %v1239 = vpop.f32.mrf.mxu0
        %v1240 = vadd.f32 %v391, %v1239
        %1241 = vmatmul.bf16.gmra.mxu0 %v916
        %v1242 = vpop.f32.mrf.mxu0
        %v1243 = vadd.f32 %v391, %v1242
        %v1244 = vpop.f32.mrf.mxu0
        %v1245 = vadd.f32 %v391, %v1244
        %1246 = vdwg.mxu0
        %1247 = vxpose.xlu0.b32.start [1/16] %v928, 128
        %1248 = vxpose.xlu0.b32.cont [2/16] %v930, 128
        %1249 = vxpose.xlu0.b32.cont [3/16] %v933, 128
        %1250 = vxpose.xlu0.b32.cont [4/16] %v935, 128
        %1251 = vxpose.xlu0.b32.cont [5/16] %v938, 128
        %1252 = vxpose.xlu0.b32.cont [6/16] %v940, 128
        %1253 = vxpose.xlu0.b32.cont [7/16] %v943, 128
        %1254 = vxpose.xlu0.b32.cont [8/16] %v945, 128
        %1255 = vxpose.xlu0.b32.cont [9/16] %v948, 128
        %1256 = vxpose.xlu0.b32.cont [10/16] %v950, 128
        %1257 = vxpose.xlu0.b32.cont [11/16] %v953, 128
        %1258 = vxpose.xlu0.b32.cont [12/16] %v955, 128
        %1259 = vxpose.xlu0.b32.cont [13/16] %v958, 128
        %1260 = vxpose.xlu0.b32.cont [14/16] %v960, 128
        %1261 = vxpose.xlu0.b32.cont [15/16] %v963, 128
        %1262 = vxpose.xlu0.b32.end [16/16] %v965, 128
        %v1263 = vpop.trf.xlu0
        %v1264 = vpop.trf.xlu0
        %v1265 = vpop.trf.xlu0
        %v1266 = vpop.trf.xlu0
        %v1267 = vpop.trf.xlu0
        %v1268 = vpop.trf.xlu0
        %v1269 = vpop.trf.xlu0
        %v1270 = vpop.trf.xlu0
        %v1271 = vpop.trf.xlu0
        %v1272 = vpop.trf.xlu0
        %v1273 = vpop.trf.xlu0
        %v1274 = vpop.trf.xlu0
        %v1275 = vpop.trf.xlu0
        %v1276 = vpop.trf.xlu0
        %v1277 = vpop.trf.xlu0
        %v1278 = vpop.trf.xlu0
        %1279 = vxpose.xlu0.b32.start [1/16] %v968, 128
        %1280 = vxpose.xlu0.b32.cont [2/16] %v970, 128
        %1281 = vxpose.xlu0.b32.cont [3/16] %v973, 128
        %1282 = vxpose.xlu0.b32.cont [4/16] %v975, 128
        %1283 = vxpose.xlu0.b32.cont [5/16] %v978, 128
        %1284 = vxpose.xlu0.b32.cont [6/16] %v980, 128
        %1285 = vxpose.xlu0.b32.cont [7/16] %v983, 128
        %1286 = vxpose.xlu0.b32.cont [8/16] %v985, 128
        %1287 = vxpose.xlu0.b32.cont [9/16] %v988, 128
        %1288 = vxpose.xlu0.b32.cont [10/16] %v990, 128
        %1289 = vxpose.xlu0.b32.cont [11/16] %v993, 128
        %1290 = vxpose.xlu0.b32.cont [12/16] %v995, 128
        %1291 = vxpose.xlu0.b32.cont [13/16] %v998, 128
        %1292 = vxpose.xlu0.b32.cont [14/16] %v1000, 128
        %1293 = vxpose.xlu0.b32.cont [15/16] %v1003, 128
        %1294 = vxpose.xlu0.b32.end [16/16] %v1005, 128
        %v1295 = vpop.trf.xlu0
        %v1296 = vpop.trf.xlu0
        %v1297 = vpop.trf.xlu0
        %v1298 = vpop.trf.xlu0
        %v1299 = vpop.trf.xlu0
        %v1300 = vpop.trf.xlu0
        %v1301 = vpop.trf.xlu0
        %v1302 = vpop.trf.xlu0
        %v1303 = vpop.trf.xlu0
        %v1304 = vpop.trf.xlu0
        %v1305 = vpop.trf.xlu0
        %v1306 = vpop.trf.xlu0
        %v1307 = vpop.trf.xlu0
        %v1308 = vpop.trf.xlu0
        %v1309 = vpop.trf.xlu0
        %v1310 = vpop.trf.xlu0
        %1311 = vxpose.xlu0.b32.start [1/16] %v1008, 128
        %1312 = vxpose.xlu0.b32.cont [2/16] %v1010, 128
        %1313 = vxpose.xlu0.b32.cont [3/16] %v1013, 128
        %1314 = vxpose.xlu0.b32.cont [4/16] %v1015, 128
        %1315 = vxpose.xlu0.b32.cont [5/16] %v1018, 128
        %1316 = vxpose.xlu0.b32.cont [6/16] %v1020, 128
        %1317 = vxpose.xlu0.b32.cont [7/16] %v1023, 128
        %1318 = vxpose.xlu0.b32.cont [8/16] %v1025, 128
        %1319 = vxpose.xlu0.b32.cont [9/16] %v1028, 128
        %1320 = vxpose.xlu0.b32.cont [10/16] %v1030, 128
        %1321 = vxpose.xlu0.b32.cont [11/16] %v1033, 128
        %1322 = vxpose.xlu0.b32.cont [12/16] %v1035, 128
        %1323 = vxpose.xlu0.b32.cont [13/16] %v1038, 128
        %1324 = vxpose.xlu0.b32.cont [14/16] %v1040, 128
        %1325 = vxpose.xlu0.b32.cont [15/16] %v1043, 128
        %1326 = vxpose.xlu0.b32.end [16/16] %v1045, 128
        %v1327 = vpop.trf.xlu0
        %v1328 = vpop.trf.xlu0
        %v1329 = vpop.trf.xlu0
        %v1330 = vpop.trf.xlu0
        %v1331 = vpop.trf.xlu0
        %v1332 = vpop.trf.xlu0
        %v1333 = vpop.trf.xlu0
        %v1334 = vpop.trf.xlu0
        %v1335 = vpop.trf.xlu0
        %v1336 = vpop.trf.xlu0
        %v1337 = vpop.trf.xlu0
        %v1338 = vpop.trf.xlu0
        %v1339 = vpop.trf.xlu0
        %v1340 = vpop.trf.xlu0
        %v1341 = vpop.trf.xlu0
        %v1342 = vpop.trf.xlu0
        %1343 = vxpose.xlu0.b32.start [1/16] %v1048, 128
        %1344 = vxpose.xlu0.b32.cont [2/16] %v1050, 128
        %1345 = vxpose.xlu0.b32.cont [3/16] %v1053, 128
        %1346 = vxpose.xlu0.b32.cont [4/16] %v1055, 128
        %1347 = vxpose.xlu0.b32.cont [5/16] %v1058, 128
        %1348 = vxpose.xlu0.b32.cont [6/16] %v1060, 128
        %1349 = vxpose.xlu0.b32.cont [7/16] %v1063, 128
        %1350 = vxpose.xlu0.b32.cont [8/16] %v1065, 128
        %1351 = vxpose.xlu0.b32.cont [9/16] %v1068, 128
        %1352 = vxpose.xlu0.b32.cont [10/16] %v1070, 128
        %1353 = vxpose.xlu0.b32.cont [11/16] %v1073, 128
        %1354 = vxpose.xlu0.b32.cont [12/16] %v1075, 128
        %1355 = vxpose.xlu0.b32.cont [13/16] %v1078, 128
        %1356 = vxpose.xlu0.b32.cont [14/16] %v1080, 128
        %1357 = vxpose.xlu0.b32.cont [15/16] %v1083, 128
        %1358 = vxpose.xlu0.b32.end [16/16] %v1085, 128
        %v1359 = vpop.trf.xlu0
        %v1360 = vpop.trf.xlu0
        %v1361 = vpop.trf.xlu0
        %v1362 = vpop.trf.xlu0
        %v1363 = vpop.trf.xlu0
        %v1364 = vpop.trf.xlu0
        %v1365 = vpop.trf.xlu0
        %v1366 = vpop.trf.xlu0
        %v1367 = vpop.trf.xlu0
        %v1368 = vpop.trf.xlu0
        %v1369 = vpop.trf.xlu0
        %v1370 = vpop.trf.xlu0
        %v1371 = vpop.trf.xlu0
        %v1372 = vpop.trf.xlu0
        %v1373 = vpop.trf.xlu0
        %v1374 = vpop.trf.xlu0
        %1375 = vxpose.xlu0.b32.start [1/16] %v1088, 128
        %1376 = vxpose.xlu0.b32.cont [2/16] %v1090, 128
        %1377 = vxpose.xlu0.b32.cont [3/16] %v1093, 128
        %1378 = vxpose.xlu0.b32.cont [4/16] %v1095, 128
        %1379 = vxpose.xlu0.b32.cont [5/16] %v1098, 128
        %1380 = vxpose.xlu0.b32.cont [6/16] %v1100, 128
        %1381 = vxpose.xlu0.b32.cont [7/16] %v1103, 128
        %1382 = vxpose.xlu0.b32.cont [8/16] %v1105, 128
        %1383 = vxpose.xlu0.b32.cont [9/16] %v1108, 128
        %1384 = vxpose.xlu0.b32.cont [10/16] %v1110, 128
        %1385 = vxpose.xlu0.b32.cont [11/16] %v1113, 128
        %1386 = vxpose.xlu0.b32.cont [12/16] %v1115, 128
        %1387 = vxpose.xlu0.b32.cont [13/16] %v1118, 128
        %1388 = vxpose.xlu0.b32.cont [14/16] %v1120, 128
        %1389 = vxpose.xlu0.b32.cont [15/16] %v1123, 128
        %1390 = vxpose.xlu0.b32.end [16/16] %v1125, 128
        %v1391 = vpop.trf.xlu0
        %v1392 = vpop.trf.xlu0
        %v1393 = vpop.trf.xlu0
        %v1394 = vpop.trf.xlu0
        %v1395 = vpop.trf.xlu0
        %v1396 = vpop.trf.xlu0
        %v1397 = vpop.trf.xlu0
        %v1398 = vpop.trf.xlu0
        %v1399 = vpop.trf.xlu0
        %v1400 = vpop.trf.xlu0
        %v1401 = vpop.trf.xlu0
        %v1402 = vpop.trf.xlu0
        %v1403 = vpop.trf.xlu0
        %v1404 = vpop.trf.xlu0
        %v1405 = vpop.trf.xlu0
        %v1406 = vpop.trf.xlu0
        %1407 = vxpose.xlu0.b32.start [1/16] %v1128, 128
        %1408 = vxpose.xlu0.b32.cont [2/16] %v1130, 128
        %1409 = vxpose.xlu0.b32.cont [3/16] %v1133, 128
        %1410 = vxpose.xlu0.b32.cont [4/16] %v1135, 128
        %1411 = vxpose.xlu0.b32.cont [5/16] %v1138, 128
        %1412 = vxpose.xlu0.b32.cont [6/16] %v1140, 128
        %1413 = vxpose.xlu0.b32.cont [7/16] %v1143, 128
        %1414 = vxpose.xlu0.b32.cont [8/16] %v1145, 128
        %1415 = vxpose.xlu0.b32.cont [9/16] %v1148, 128
        %1416 = vxpose.xlu0.b32.cont [10/16] %v1150, 128
        %1417 = vxpose.xlu0.b32.cont [11/16] %v1153, 128
        %1418 = vxpose.xlu0.b32.cont [12/16] %v1155, 128
        %1419 = vxpose.xlu0.b32.cont [13/16] %v1158, 128
        %1420 = vxpose.xlu0.b32.cont [14/16] %v1160, 128
        %1421 = vxpose.xlu0.b32.cont [15/16] %v1163, 128
        %1422 = vxpose.xlu0.b32.end [16/16] %v1165, 128
        %v1423 = vpop.trf.xlu0
        %v1424 = vpop.trf.xlu0
        %v1425 = vpop.trf.xlu0
        %v1426 = vpop.trf.xlu0
        %v1427 = vpop.trf.xlu0
        %v1428 = vpop.trf.xlu0
        %v1429 = vpop.trf.xlu0
        %v1430 = vpop.trf.xlu0
        %v1431 = vpop.trf.xlu0
        %v1432 = vpop.trf.xlu0
        %v1433 = vpop.trf.xlu0
        %v1434 = vpop.trf.xlu0
        %v1435 = vpop.trf.xlu0
        %v1436 = vpop.trf.xlu0
        %v1437 = vpop.trf.xlu0
        %v1438 = vpop.trf.xlu0
        %1439 = vxpose.xlu0.b32.start [1/16] %v1168, 128
        %1440 = vxpose.xlu0.b32.cont [2/16] %v1170, 128
        %1441 = vxpose.xlu0.b32.cont [3/16] %v1173, 128
        %1442 = vxpose.xlu0.b32.cont [4/16] %v1175, 128
        %1443 = vxpose.xlu0.b32.cont [5/16] %v1178, 128
        %1444 = vxpose.xlu0.b32.cont [6/16] %v1180, 128
        %1445 = vxpose.xlu0.b32.cont [7/16] %v1183, 128
        %1446 = vxpose.xlu0.b32.cont [8/16] %v1185, 128
        %1447 = vxpose.xlu0.b32.cont [9/16] %v1188, 128
        %1448 = vxpose.xlu0.b32.cont [10/16] %v1190, 128
        %1449 = vxpose.xlu0.b32.cont [11/16] %v1193, 128
        %1450 = vxpose.xlu0.b32.cont [12/16] %v1195, 128
        %1451 = vxpose.xlu0.b32.cont [13/16] %v1198, 128
        %1452 = vxpose.xlu0.b32.cont [14/16] %v1200, 128
        %1453 = vxpose.xlu0.b32.cont [15/16] %v1203, 128
        %1454 = vxpose.xlu0.b32.end [16/16] %v1205, 128
        %v1455 = vpop.trf.xlu0
        %v1456 = vpop.trf.xlu0
        %v1457 = vpop.trf.xlu0
        %v1458 = vpop.trf.xlu0
        %v1459 = vpop.trf.xlu0
        %v1460 = vpop.trf.xlu0
        %v1461 = vpop.trf.xlu0
        %v1462 = vpop.trf.xlu0
        %v1463 = vpop.trf.xlu0
        %v1464 = vpop.trf.xlu0
        %v1465 = vpop.trf.xlu0
        %v1466 = vpop.trf.xlu0
        %v1467 = vpop.trf.xlu0
        %v1468 = vpop.trf.xlu0
        %v1469 = vpop.trf.xlu0
        %v1470 = vpop.trf.xlu0
        %1471 = vxpose.xlu0.b32.start [1/16] %v1208, 128
        %1472 = vxpose.xlu0.b32.cont [2/16] %v1210, 128
        %1473 = vxpose.xlu0.b32.cont [3/16] %v1213, 128
        %1474 = vxpose.xlu0.b32.cont [4/16] %v1215, 128
        %1475 = vxpose.xlu0.b32.cont [5/16] %v1218, 128
        %1476 = vxpose.xlu0.b32.cont [6/16] %v1220, 128
        %1477 = vxpose.xlu0.b32.cont [7/16] %v1223, 128
        %1478 = vxpose.xlu0.b32.cont [8/16] %v1225, 128
        %1479 = vxpose.xlu0.b32.cont [9/16] %v1228, 128
        %1480 = vxpose.xlu0.b32.cont [10/16] %v1230, 128
        %1481 = vxpose.xlu0.b32.cont [11/16] %v1233, 128
        %1482 = vxpose.xlu0.b32.cont [12/16] %v1235, 128
        %1483 = vxpose.xlu0.b32.cont [13/16] %v1238, 128
        %1484 = vxpose.xlu0.b32.cont [14/16] %v1240, 128
        %1485 = vxpose.xlu0.b32.cont [15/16] %v1243, 128
        %1486 = vxpose.xlu0.b32.end [16/16] %v1245, 128
        %v1487 = vpop.trf.xlu0
        %v1488 = vpop.trf.xlu0
        %v1489 = vpop.trf.xlu0
        %v1490 = vpop.trf.xlu0
        %v1491 = vpop.trf.xlu0
        %v1492 = vpop.trf.xlu0
        %v1493 = vpop.trf.xlu0
        %v1494 = vpop.trf.xlu0
        %v1495 = vpop.trf.xlu0
        %v1496 = vpop.trf.xlu0
        %v1497 = vpop.trf.xlu0
        %v1498 = vpop.trf.xlu0
        %v1499 = vpop.trf.xlu0
        %v1500 = vpop.trf.xlu0
        %v1501 = vpop.trf.xlu0
        %v1502 = vpop.trf.xlu0
        %v1503 = vld [vmem:[%s255] sm:$0xf]
        %v1504 = vunpack.c.l.bf16 %v1503
        %v1513 = vrot.slane %v1295, 7
        %v1514 = vrot.slane %v1327, 6
        %v1515 = vrot.slane %v1359, 5
        %v1516 = vrot.slane %v1391, 4
        %v1517 = vrot.slane %v1423, 3
        %v1518 = vrot.slane %v1455, 2
        %v1519 = vrot.slane %v1487, 1
        %vm1520 = vcmask 1040384
        %v1521 = vsel %vm1520, %v1263, %v1513
        %vm1522 = vcmask 1042434
        %v1523 = vsel %vm1522, %v1514, %v1515
        %vm1524 = vcmask 1041408
        %v1525 = vsel %vm1524, %v1521, %v1523
        %vm1526 = vcmask 1044484
        %v1527 = vsel %vm1526, %v1516, %v1517
        %vm1528 = vcmask 1046534
        %v1529 = vsel %vm1528, %v1518, %v1519
        %vm1530 = vcmask 1045508
        %v1531 = vsel %vm1530, %v1527, %v1529
        %vm1532 = vcmask 1043456
        %v1533 = vsel %vm1532, %v1525, %v1531
        %v1535 = vadd.f32 %v1533, %v1504
        %1536 = vmax.xlane.f32.xlu0 %v1535
        %v1537 = vpop.xlane.xlu0 %1536
        %v1538 = vsub.f32 %v1535, %v1537
        %v1539 = vmul.f32 %v1538, 1.442695
        %v1540 = vpow.pop %v1539
        %1541 = vadd.xlane.f32.xlu0 %v1540
        %v1542 = vpop.xlane.xlu0 %1541
        %v1543 = vlog2.pop %v1542
        %v1544 = vmul.f32 %v1543, 0.6931472
        %v1545 = vsub.f32 %v1538, %v1544
        %1546 = vst [vmem:[%s237] sm:$0xff] %v1545
        %1547 = vst [vmem:[#allocation1] sm:$0xff] %v1263
        %1548 = vst [vmem:[#allocation1 + $0x9] sm:$0xff] %v1295
        %1549 = vst [vmem:[#allocation1 + $0x12] sm:$0xff] %v1327
        %1550 = vst [vmem:[#allocation1 + $0x1b] sm:$0xff] %v1359
        %1551 = vst [vmem:[#allocation1 + $0x24] sm:$0xff] %v1391
        %1552 = vst [vmem:[#allocation1 + $0x2d] sm:$0xff] %v1423
        %1553 = vst [vmem:[#allocation1 + $0x36] sm:$0xff] %v1455
        %1554 = vst [vmem:[#allocation1 + $0x3f] sm:$0xff] %v1487
        %s1555 = scalar_lea.vmem [#allocation1], 1
        %v1556 = vld [vmem:[%s1555] ss:$9 sm:$0xff]
        %v1558 = vadd.f32 %v1556, %v1504
        %1559 = vmax.xlane.f32.xlu0 %v1558
        %v1560 = vpop.xlane.xlu0 %1559
        %v1561 = vsub.f32 %v1558, %v1560
        %v1562 = vmul.f32 %v1561, 1.442695
        %v1563 = vpow.pop %v1562
        %1564 = vadd.xlane.f32.xlu0 %v1563
        %v1565 = vpop.xlane.xlu0 %1564
        %v1566 = vlog2.pop %v1565
        %v1567 = vmul.f32 %v1566, 0.6931472
        %v1568 = vsub.f32 %v1561, %v1567
        %1569 = vst [vmem:[%s244] sm:$0xff] %v1568
        %s1570 = sand.u32 %s125, 1
        %s1571 = scalar_lea.sflag [#allocation3], %s1570
        %s1572 = sand.u32 %s125, 1
        %s1573 = smul.addr %s1572, 8
        %s1574 = scalar_lea.vmem [#allocation2], %s1573
        %s1575 = sand.u32 %s151, 1
        %s1576 = scalar_lea.sflag [#allocation5], %s1575
        %s1577 = sand.u32 %s151, 1
        %s1578 = smul.addr %s1577, 8
        %s1579 = scalar_lea.vmem [#allocation4], %s1578
        // Predicated region
        $region37: #{tpu_custom_call.1} parent=35 // pred_check
          %p1580 = pneg %p135
        $region38: #{tpu_custom_call.1} parent=35 // pred_check_branch
          %1582 = sbr.rel (%p1580) target = $region40
        $region39: #{tpu_custom_call.1} parent=35 // pred_region
          %1584 = vsyncadd %s1571, 0
          %s1585 = smul.addr %s23, 8
          %s1586 = scalar_lea.hbm %s4, %s1585
          %s1588 = sshll.u32 %s1574, 4
          %s1589 = int_to_ptr.vmem [resolvable:$true] %s1588
          %s1590 = sshll.u32 %s1586, 4
          %s1591 = int_to_ptr.hbm [resolvable:$true] %s1590
          %1593 = dma.vmem_to_hbm [thread:$0]  %s1589, 128, %s1591, %s1571
        $region40: #{tpu_custom_call.1} parent=35 // pred_fallthru
          _
        // Predicated region
        $region41: #{tpu_custom_call.1} parent=35 // pred_check
          %p1594 = pneg %p161
        $region42: #{tpu_custom_call.1} parent=35 // pred_check_branch
          %1596 = sbr.rel (%p1594) target = $region44
        $region43: #{tpu_custom_call.1} parent=35 // pred_region
          %1598 = vsyncadd %s1576, 0
          %s1599 = smul.addr %s23, 8
          %s1600 = scalar_lea.hbm %s5, %s1599
          %s1602 = sshll.u32 %s1579, 4
          %s1603 = int_to_ptr.vmem [resolvable:$true] %s1602
          %s1604 = sshll.u32 %s1600, 4
          %s1605 = int_to_ptr.hbm [resolvable:$true] %s1604
          %1607 = dma.vmem_to_hbm [thread:$0]  %s1603, 128, %s1605, %s1576
        $region44: #{tpu_custom_call.1} parent=35 // pred_fallthru
          _
      $region36: #{tpu_custom_call.1} parent=5 // pred_fallthru
        _
      %p1608 = scmp.le.s32.totalorder 2, %s18
      // Predicated region
      $region45: #{tpu_custom_call.1} parent=5 // pred_check
        %p1609 = pneg %p1608
      $region46: #{tpu_custom_call.1} parent=5 // pred_check_branch
        %1611 = sbr.rel (%p1609) target = $region48
      $region47: #{tpu_custom_call.1} parent=5 // pred_region
        %s1612 = ssub.s32 %s18, 2
        // Predicated region
        $region49: #{tpu_custom_call.1} parent=47 // pred_check
          %p1613 = pneg %p141
        $region50: #{tpu_custom_call.1} parent=47 // pred_check_branch
          %1615 = sbr.rel (%p1613) target = $region52
        $region51: #{tpu_custom_call.1} parent=47 // pred_region
          %s1616 = sand.u32 %s126, 1
          %s1617 = scalar_lea.sflag [#allocation3], %s1616
          %s1618 = sand.u32 %s126, 1
          %s1619 = smul.addr %s1618, 8
          %s1620 = scalar_lea.vmem [#allocation2], %s1619
          %1622 = dma.done %s1617, 128
        $region52: #{tpu_custom_call.1} parent=47 // pred_fallthru
          _
        // Predicated region
        $region53: #{tpu_custom_call.1} parent=47 // pred_check
          %p1623 = pneg %p167
        $region54: #{tpu_custom_call.1} parent=47 // pred_check_branch
          %1625 = sbr.rel (%p1623) target = $region56
        $region55: #{tpu_custom_call.1} parent=47 // pred_region
          %s1626 = sand.u32 %s152, 1
          %s1627 = scalar_lea.sflag [#allocation5], %s1626
          %s1628 = sand.u32 %s152, 1
          %s1629 = smul.addr %s1628, 8
          %s1630 = scalar_lea.vmem [#allocation4], %s1629
          %1632 = dma.done %s1627, 128
        $region56: #{tpu_custom_call.1} parent=47 // pred_fallthru
          _
      $region48: #{tpu_custom_call.1} parent=5 // pred_fallthru
        _
    $region6: #{tpu_custom_call.1} parent=1 // loop_footer
      %s22 = sadd.s32 1, %s18
    $region7: #{tpu_custom_call.1} parent=1 // loop_footer_branch
      %17 = sbr.rel target = $region3
    $region8: #{tpu_custom_call.1} parent=1 // loop_exit
      _
    %1633 = vsyncpa [#allocation3], 1
    %s1634 = scalar_lea.sflag [#allocation3], 1
    %1635 = vsyncpa %s1634, 1
    %1636 = vsyncpa [#allocation5], 1
    %s1637 = scalar_lea.sflag [#allocation5], 1
    %1638 = vsyncpa %s1637, 1

</llo_original>
